<compile_context>
chip_gen: v7x
topology: tpu7x:2x2x1
jax: 0.10.0
libtpu: 0.0.40
codegen_flags: <defaults>
</compile_context>

<pallas_src>
import jax
import jax.numpy as jnp
from jax.experimental import pallas as pl
from jax.experimental.pallas import tpu as pltpu


def _round_up(v, m):
    return (v + m - 1) // m * m


# ------------------------------ fused kernel -------------------------------- #

def _tri_gnn_kernel(xy_ref, gsel_ref, gsrc_ref, gtgt_ref, wlin_ref,
                    w1_ref, b1_ref, w2_ref, b2_ref, o_ref, acc_ref):
    k = pl.program_id(1)
    dp = wlin_ref.shape[0]                       # padded embedding dim (static)

    @pl.when(k == 0)
    def _():
        acc_ref[...] = jnp.zeros_like(acc_ref)

    # 1) encode the current node tile: normalize -> Linear(no bias) -> tanh ->
    #    normalize.  F.normalize(v) == v * rsqrt(max(sum(v*v), eps^2)) with
    #    eps=1e-12 -> EUP rsqrt, no VPU divide.  Math in f32, MXU feeds bf16.
    v = xy_ref[...].astype(jnp.float32)
    v = v * jax.lax.rsqrt(jnp.maximum(jnp.sum(v * v, -1, keepdims=True), 1e-24))
    h = jnp.dot(v.astype(jnp.bfloat16), wlin_ref[...],
                preferred_element_type=jnp.float32)
    h = jnp.tanh(h)
    h = h * jax.lax.rsqrt(jnp.maximum(jnp.sum(h * h, -1, keepdims=True), 1e-24))
    h = h.astype(jnp.bfloat16)                   # (tile_n, dp)

    # 2) accumulate this node tile's contribution to
    #      [ h[matched] | scaled src-neighborhood sum | scaled tgt-neighborhood sum ]
    #    in three disjoint, 128-aligned column bands of the f32 accumulator.
    acc_ref[:, 0 * dp:1 * dp] += jnp.dot(gsel_ref[...], h,
                                         preferred_element_type=jnp.float32)
    acc_ref[:, 1 * dp:2 * dp] += jnp.dot(gsrc_ref[...], h,
                                         preferred_element_type=jnp.float32)
    acc_ref[:, 2 * dp:3 * dp] += jnp.dot(gtgt_ref[...], h,
                                         preferred_element_type=jnp.float32)

    # 3) finalize: MLP.  The feature concat is folded into the accumulator
    #    layout, so the first layer is one K=3*dp matmul; output is lane-dense.
    @pl.when(k == pl.num_programs(1) - 1)
    def _():
        feats = acc_ref[...].astype(jnp.bfloat16)
        hid = jnp.dot(feats, w1_ref[...],
                      preferred_element_type=jnp.float32) + b1_ref[...]
        hid = jnp.maximum(hid, 0.0).astype(jnp.bfloat16)
        o_ref[...] = (jnp.dot(hid, w2_ref[...],
                              preferred_element_type=jnp.float32) + b2_ref[...])


# ------------------------------ wrapper -------------------------------------- #

def tri_gnn_forward(params, x, y, i_idx, j_idx, edges, *, tile_m=128, tile_n=512):
    """Returns (xx, yy): neighborhood embeddings [len(i), 3*dim], [len(j), 3*dim]."""
    i_s, i_t, j_s, j_t = edges
    n_x, n_y = x.shape[0], y.shape[0]
    m_i, m_j = i_idx.shape[0], j_idx.shape[0]
    dim = x.shape[1]
    d_hid = params["w1"].shape[0]
    d_out = params["w2"].shape[0]

    # ---- lane/sublane-dense padded sizes ------------------------------------
    dim_p = _round_up(dim, 128)                  # 32  -> 128
    d_hid_p = _round_up(d_hid, 128)              # 192 -> 256
    d_out_p = _round_up(d_out, 128)              # 96  -> 128

    n_tot = n_x + n_y
    m_tot = m_i + m_j
    tile_m = min(tile_m, _round_up(m_tot, 8))
    tile_n = min(tile_n, _round_up(n_tot, 128))
    m_pad = _round_up(m_tot, tile_m)
    n_pad = _round_up(n_tot, tile_n)
    grid = (m_pad // tile_m, n_pad // tile_n)

    # ---- static edge-count scales (compile-time constants) -------------------
    e_is, e_it = i_s.shape[1], i_t.shape[1]
    e_js, e_jt = j_s.shape[1], j_t.shape[1]
    # TODO(synk): literal PyTorch `len(i_s)` on a [2, E] edge_index tensor is 2
    # (all scales would be 0.5); we keep the intended fraction-of-edges weighting.
    s_is, s_it = e_is / (e_is + e_it), e_it / (e_is + e_it)
    s_js, s_jt = e_js / (e_js + e_jt), e_jt / (e_js + e_jt)

    # ---- dense operators: matched-row gather (sel) + scaled scatter-add
    # ---- adjacencies for source/target neighborhoods, built once from the
    # ---- integer inputs (XLA glue). ------------------------------------------
    # TODO(synk): for realistic graph sizes drop the dense O(m*n) G and do the
    # aggregation as a scalar-prefetched gather + segment-sum inside the kernel.
    def adj(edge_index, n_rows, col_off):
        a = jnp.zeros((n_rows, n_pad), jnp.float32)
        return a.at[edge_index[0], edge_index[1] + col_off].add(1.0)

    sel_i = jax.nn.one_hot(i_idx, n_pad, dtype=jnp.float32)          # (m_i, n_pad)
    sel_j = jax.nn.one_hot(j_idx + n_x, n_pad, dtype=jnp.float32)    # (m_j, n_pad)
    a_is = adj(i_s, n_x, 0)[i_idx]
    a_it = adj(i_t, n_x, 0)[i_idx]
    a_js = adj(j_s, n_y, n_x)[j_idx]
    a_jt = adj(j_t, n_y, n_x)[j_idx]

    def pad_rows(top, bot):
        g = jnp.zeros((m_pad, n_pad), jnp.float32)
        return g.at[:m_i].set(top).at[m_i:m_tot].set(bot).astype(jnp.bfloat16)

    g_sel = pad_rows(sel_i, sel_j)
    g_src = pad_rows(s_is * a_is, s_js * a_js)
    g_tgt = pad_rows(s_it * a_it, s_jt * a_jt)

    # ---- stacked, zero-padded node embeddings (bf16 MXU operand) -------------
    xy = jnp.zeros((n_pad, dim_p), jnp.float32)
    xy = xy.at[:n_x, :dim].set(x).at[n_x:n_tot, :dim].set(y).astype(jnp.bfloat16)

    # ---- weights: pre-transposed to [in, out], zero-padded, bf16 -------------
    w_lin_t = (jnp.zeros((dim_p, dim_p), jnp.float32)
               .at[:dim, :dim].set(params["w_lin"].T).astype(jnp.bfloat16))
    w1_src = params["w1"].T                                   # (3*dim, d_hid)
    w1_t = jnp.zeros((3 * dim_p, d_hid_p), jnp.float32)
    for c in range(3):                                        # chunk-aligned rows
        w1_t = w1_t.at[c * dim_p:c * dim_p + dim, :d_hid].set(
            w1_src[c * dim:(c + 1) * dim])
    w1_t = w1_t.astype(jnp.bfloat16)
    b1 = jnp.zeros((1, d_hid_p), jnp.float32).at[:, :d_hid].set(params["b1"])
    w2_t = (jnp.zeros((d_hid_p, d_out_p), jnp.float32)
            .at[:d_hid, :d_out].set(params["w2"].T).astype(jnp.bfloat16))
    b2 = jnp.zeros((1, d_out_p), jnp.float32).at[:, :d_out].set(params["b2"])

    out = pl.pallas_call(
        _tri_gnn_kernel,
        out_shape=jax.ShapeDtypeStruct((m_pad, d_out_p), jnp.float32),
        grid_spec=pltpu.PrefetchScalarGridSpec(
            num_scalar_prefetch=0,
            grid=grid,
            in_specs=[
                pl.BlockSpec((tile_n, dim_p), lambda i, k: (k, 0)),       # xy
                pl.BlockSpec((tile_m, tile_n), lambda i, k: (i, k)),      # g_sel
                pl.BlockSpec((tile_m, tile_n), lambda i, k: (i, k)),      # g_src
                pl.BlockSpec((tile_m, tile_n), lambda i, k: (i, k)),      # g_tgt
                pl.BlockSpec((dim_p, dim_p), lambda i, k: (0, 0)),        # w_lin
                pl.BlockSpec((3 * dim_p, d_hid_p), lambda i, k: (0, 0)),  # w1
                pl.BlockSpec((1, d_hid_p), lambda i, k: (0, 0)),          # b1
                pl.BlockSpec((d_hid_p, d_out_p), lambda i, k: (0, 0)),    # w2
                pl.BlockSpec((1, d_out_p), lambda i, k: (0, 0)),          # b2
            ],
            out_specs=pl.BlockSpec((tile_m, d_out_p), lambda i, k: (i, 0)),
            scratch_shapes=[pltpu.VMEM((tile_m, 3 * dim_p), jnp.float32)],
        ),
        # Tiling keeps the per-step VMEM footprint (~2 MiB at default tiles)
        # well under every generation's scoped default, so no vmem_limit_bytes.
        compiler_params=pltpu.CompilerParams(
            dimension_semantics=("parallel", "arbitrary")),
    )(xy, g_sel, g_src, g_tgt, w_lin_t, w1_t, b1, w2_t, b2)

    out = out[:m_tot, :d_out]
    return out[:m_i], out[m_i:]


# ------------------------------ reference / init ----------------------------- #

def _reference(params, x, y, i_idx, j_idx, edges):
    """Pure-JAX f32 reference for parity checking."""
    hi = jax.lax.Precision.HIGHEST

    def norm(v):
        return v / jnp.maximum(jnp.linalg.norm(v, axis=-1, keepdims=True), 1e-12)

    hx = norm(jnp.tanh(jnp.dot(norm(x), params["w_lin"].T, precision=hi)))
    hy = norm(jnp.tanh(jnp.dot(norm(y), params["w_lin"].T, precision=hi)))
    i_s, i_t, j_s, j_t = edges

    def agg(h, e):
        return jnp.zeros_like(h).at[e[0]].add(h[e[1]])

    e_is, e_it = i_s.shape[1], i_t.shape[1]
    e_js, e_jt = j_s.shape[1], j_t.shape[1]
    x_s = agg(hx, i_s) * (e_is / (e_is + e_it))
    x_t = agg(hx, i_t) * (e_it / (e_is + e_it))
    y_s = agg(hy, j_s) * (e_js / (e_js + e_jt))
    y_t = agg(hy, j_t) * (e_jt / (e_js + e_jt))

    def mlp(v):
        h = jnp.maximum(jnp.dot(v, params["w1"].T, precision=hi) + params["b1"], 0.0)
        return jnp.dot(h, params["w2"].T, precision=hi) + params["b2"]

    xx = mlp(jnp.concatenate([hx[i_idx], x_s[i_idx], x_t[i_idx]], axis=1))
    yy = mlp(jnp.concatenate([hy[j_idx], y_s[j_idx], y_t[j_idx]], axis=1))
    return xx, yy


def _init_params(key, dim):
    # TODO(synk): the MLP class definition is not given; assumed
    # MLP(in=3*dim, out=3*dim, hidden=2*3*dim) = Linear + ReLU + Linear.
    d_in = 3 * dim
    d_hid = 2 * d_in
    k1, k2, k3, k4, k5 = jax.random.split(key, 5)
    return {
        "w_lin": jax.random.normal(k1, (dim, dim), jnp.float32) * (1.0 / jnp.sqrt(dim)),
        "w1": jax.random.normal(k2, (d_hid, d_in), jnp.float32) * (1.0 / jnp.sqrt(d_in)),
        "b1": jax.random.normal(k3, (d_hid,), jnp.float32) * 0.01,
        "w2": jax.random.normal(k4, (d_in, d_hid), jnp.float32) * (1.0 / jnp.sqrt(d_hid)),
        "b2": jax.random.normal(k5, (d_in,), jnp.float32) * 0.01,
    }


# --------------------------------- main --------------------------------------- #

if __name__ == "__main__":
    dim = 32            # user-embedding dimension
    n_x, n_y = 16, 16   # users in source / target network
    m_i, m_j = 8, 8     # matched users
    key = jax.random.PRNGKey(0)
    kp, kx, ky, k_is, k_it, k_js, k_jt, ki, kj = jax.random.split(key, 9)

    params = _init_params(kp, dim)
    x = jax.random.normal(kx, (n_x, dim), jnp.float32)
    y = jax.random.normal(ky, (n_y, dim), jnp.float32)

    def rand_edges(k, n, e):
        return jax.random.randint(k, (2, e), 0, n, dtype=jnp.int32)

    edges = (rand_edges(k_is, n_x, 20),   # i_s: matched neighbors, source net
             rand_edges(k_it, n_x, 12),   # i_t: unmatched neighbors, source net
             rand_edges(k_js, n_y, 18),   # j_s: matched neighbors, target net
             rand_edges(k_jt, n_y, 10))   # j_t: unmatched neighbors, target net
    i_idx = jax.random.permutation(ki, n_x)[:m_i].astype(jnp.int32)
    j_idx = jax.random.permutation(kj, n_y)[:m_j].astype(jnp.int32)

    xx, yy = tri_gnn_forward(params, x, y, i_idx, j_idx, edges)
    jax.block_until_ready((xx, yy))
    assert xx.shape == (m_i, 3 * dim) and yy.shape == (m_j, 3 * dim)

    xx_ref, yy_ref = _reference(params, x, y, i_idx, j_idx, edges)
    assert jnp.allclose(xx, xx_ref, rtol=1e-2, atol=1e-2)
    assert jnp.allclose(yy, yy_ref, rtol=1e-2, atol=1e-2)
    print("KERNEL_OK")
</pallas_src>

<mosaic_0001>
module attributes {stable_mosaic.version = 11 : i64} {
  func.func @_tri_gnn_kernel(%arg0: i32, %arg1: i32, %arg2: memref<128x128xbf16, #tpu.memory_space<vmem>>, %arg3: memref<16x128xbf16, #tpu.memory_space<vmem>>, %arg4: memref<16x128xbf16, #tpu.memory_space<vmem>>, %arg5: memref<16x128xbf16, #tpu.memory_space<vmem>>, %arg6: memref<128x128xbf16, #tpu.memory_space<vmem>>, %arg7: memref<384x256xbf16, #tpu.memory_space<vmem>>, %arg8: memref<1x256xf32, #tpu.memory_space<vmem>>, %arg9: memref<256x128xbf16, #tpu.memory_space<vmem>>, %arg10: memref<1x128xf32, #tpu.memory_space<vmem>>, %arg11: memref<16x128xf32, #tpu.memory_space<vmem>>, %arg12: memref<16x384xf32, #tpu.memory_space<vmem>>) attributes {dimension_semantics = [#tpu.dimension_semantics<parallel>, #tpu.dimension_semantics<arbitrary>], iteration_bounds = array<i64: 1, 1>, scalar_prefetch = 0 : i64, scratch_operands = 1 : i64, tpu.core_type = #tpu.core_type<tc>, window_params = [{transform_indices = @transform_0, window_bounds = array<i64: 128, 128>}, {transform_indices = @transform_1, window_bounds = array<i64: 16, 128>}, {transform_indices = @transform_2, window_bounds = array<i64: 16, 128>}, {transform_indices = @transform_3, window_bounds = array<i64: 16, 128>}, {pipeline_mode = #tpu.pipeline_mode<synchronous>, transform_indices = @transform_4, window_bounds = array<i64: 128, 128>}, {pipeline_mode = #tpu.pipeline_mode<synchronous>, transform_indices = @transform_5, window_bounds = array<i64: 384, 256>}, {pipeline_mode = #tpu.pipeline_mode<synchronous>, transform_indices = @transform_6, window_bounds = array<i64: 1, 256>}, {pipeline_mode = #tpu.pipeline_mode<synchronous>, transform_indices = @transform_7, window_bounds = array<i64: 256, 128>}, {pipeline_mode = #tpu.pipeline_mode<synchronous>, transform_indices = @transform_8, window_bounds = array<i64: 1, 128>}, {transform_indices = @transform_9, window_bounds = array<i64: 16, 128>}]} {
    %c0_i32 = arith.constant 0 : i32
    %0 = arith.cmpi eq, %arg1, %c0_i32 : i32
    %1 = arith.extui %0 : i1 to i32
    %c0_i32_0 = arith.constant 0 : i32
    %2 = arith.cmpi ne, %1, %c0_i32_0 : i32
    scf.if %2 {
      %cst_29 = arith.constant 0.000000e+00 : f32
      %44 = vector.broadcast %cst_29 : f32 to vector<16x384xf32>
      %c0_30 = arith.constant 0 : index
      %c0_31 = arith.constant 0 : index
      %45 = vector.load %arg12[%c0_30, %c0_31] : memref<16x384xf32, #tpu.memory_space<vmem>>, vector<16x384xf32>
      tpu.vector_store %arg12[%c0_30, %c0_31], %44 {strides = array<i32>} : memref<16x384xf32, #tpu.memory_space<vmem>>, vector<16x384xf32>,
    } else {
    }
    %c0 = arith.constant 0 : index
    %c0_1 = arith.constant 0 : index
    %3 = vector.load %arg2[%c0, %c0_1] : memref<128x128xbf16, #tpu.memory_space<vmem>>, vector<128x128xbf16>
    %4 = arith.extf %3 : vector<128x128xbf16> to vector<128x128xf32>
    %5 = arith.mulf %4, %4 : vector<128x128xf32>
    %cst = arith.constant dense<0.000000e+00> : vector<128xf32>
    %6 = vector.multi_reduction <add>, %5, %cst [1] : vector<128x128xf32> to vector<128xf32>
    %7 = vector.shape_cast %6 : vector<128xf32> to vector<128x1xf32>
    %cst_2 = arith.constant 1.000000e-24 : f32
    %8 = vector.broadcast %cst_2 : f32 to vector<128x1xf32>
    %9 = arith.maximumf %7, %8 : vector<128x1xf32>
    %10 = math.rsqrt %9 : vector<128x1xf32>
    %11 = vector.broadcast %10 : vector<128x1xf32> to vector<128x128xf32>
    %12 = arith.mulf %4, %11 : vector<128x128xf32>
    %13 = arith.truncf %12 : vector<128x128xf32> to vector<128x128xbf16>
    %c0_3 = arith.constant 0 : index
    %c0_4 = arith.constant 0 : index
    %14 = vector.load %arg6[%c0_3, %c0_4] : memref<128x128xbf16, #tpu.memory_space<vmem>>, vector<128x128xbf16>
    %cst_5 = arith.constant dense<0.000000e+00> : vector<128x128xf32>
    %15 = tpu.matmul %13, %14, %cst_5 {dimension_numbers = #tpu.dot_dimension_numbers<[1], [0], [0], [1], [0, 0, 1, 1], [], []>} : vector<128x128xbf16>, vector<128x128xbf16>, vector<128x128xf32> -> vector<128x128xf32>
    %16 = math.tanh %15 : vector<128x128xf32>
    %17 = arith.mulf %16, %16 : vector<128x128xf32>
    %cst_6 = arith.constant dense<0.000000e+00> : vector<128xf32>
    %18 = vector.multi_reduction <add>, %17, %cst_6 [1] : vector<128x128xf32> to vector<128xf32>
    %19 = vector.shape_cast %18 : vector<128xf32> to vector<128x1xf32>
    %cst_7 = arith.constant 1.000000e-24 : f32
    %20 = vector.broadcast %cst_7 : f32 to vector<128x1xf32>
    %21 = arith.maximumf %19, %20 : vector<128x1xf32>
    %22 = math.rsqrt %21 : vector<128x1xf32>
    %23 = vector.broadcast %22 : vector<128x1xf32> to vector<128x128xf32>
    %24 = arith.mulf %16, %23 : vector<128x128xf32>
    %25 = arith.truncf %24 : vector<128x128xf32> to vector<128x128xbf16>
    %c0_8 = arith.constant 0 : index
    %c0_9 = arith.constant 0 : index
    %26 = vector.load %arg12[%c0_8, %c0_9] : memref<16x384xf32, #tpu.memory_space<vmem>>, vector<16x128xf32>
    %c0_10 = arith.constant 0 : index
    %c0_11 = arith.constant 0 : index
    %27 = vector.load %arg3[%c0_10, %c0_11] : memref<16x128xbf16, #tpu.memory_space<vmem>>, vector<16x128xbf16>
    %cst_12 = arith.constant dense<0.000000e+00> : vector<16x128xf32>
    %28 = tpu.matmul %27, %25, %cst_12 {dimension_numbers = #tpu.dot_dimension_numbers<[1], [0], [0], [1], [0, 0, 1, 1], [], []>} : vector<16x128xbf16>, vector<128x128xbf16>, vector<16x128xf32> -> vector<16x128xf32>
    %29 = arith.addf %26, %28 : vector<16x128xf32>
    %c0_13 = arith.constant 0 : index
    %c0_14 = arith.constant 0 : index
    %30 = vector.load %arg12[%c0_13, %c0_14] : memref<16x384xf32, #tpu.memory_space<vmem>>, vector<16x128xf32>
    tpu.vector_store %arg12[%c0_13, %c0_14], %29 {strides = array<i32>} : memref<16x384xf32, #tpu.memory_space<vmem>>, vector<16x128xf32>,
    %c0_15 = arith.constant 0 : index
    %c128 = arith.constant 128 : index
    %31 = vector.load %arg12[%c0_15, %c128] : memref<16x384xf32, #tpu.memory_space<vmem>>, vector<16x128xf32>
    %c0_16 = arith.constant 0 : index
    %c0_17 = arith.constant 0 : index
    %32 = vector.load %arg4[%c0_16, %c0_17] : memref<16x128xbf16, #tpu.memory_space<vmem>>, vector<16x128xbf16>
    %cst_18 = arith.constant dense<0.000000e+00> : vector<16x128xf32>
    %33 = tpu.matmul %32, %25, %cst_18 {dimension_numbers = #tpu.dot_dimension_numbers<[1], [0], [0], [1], [0, 0, 1, 1], [], []>} : vector<16x128xbf16>, vector<128x128xbf16>, vector<16x128xf32> -> vector<16x128xf32>
    %34 = arith.addf %31, %33 : vector<16x128xf32>
    %c0_19 = arith.constant 0 : index
    %c128_20 = arith.constant 128 : index
    %35 = vector.load %arg12[%c0_19, %c128_20] : memref<16x384xf32, #tpu.memory_space<vmem>>, vector<16x128xf32>
    tpu.vector_store %arg12[%c0_19, %c128_20], %34 {strides = array<i32>} : memref<16x384xf32, #tpu.memory_space<vmem>>, vector<16x128xf32>,
    %c0_21 = arith.constant 0 : index
    %c256 = arith.constant 256 : index
    %36 = vector.load %arg12[%c0_21, %c256] : memref<16x384xf32, #tpu.memory_space<vmem>>, vector<16x128xf32>
    %c0_22 = arith.constant 0 : index
    %c0_23 = arith.constant 0 : index
    %37 = vector.load %arg5[%c0_22, %c0_23] : memref<16x128xbf16, #tpu.memory_space<vmem>>, vector<16x128xbf16>
    %cst_24 = arith.constant dense<0.000000e+00> : vector<16x128xf32>
    %38 = tpu.matmul %37, %25, %cst_24 {dimension_numbers = #tpu.dot_dimension_numbers<[1], [0], [0], [1], [0, 0, 1, 1], [], []>} : vector<16x128xbf16>, vector<128x128xbf16>, vector<16x128xf32> -> vector<16x128xf32>
    %39 = arith.addf %36, %38 : vector<16x128xf32>
    %c0_25 = arith.constant 0 : index
    %c256_26 = arith.constant 256 : index
    %40 = vector.load %arg12[%c0_25, %c256_26] : memref<16x384xf32, #tpu.memory_space<vmem>>, vector<16x128xf32>
    tpu.vector_store %arg12[%c0_25, %c256_26], %39 {strides = array<i32>} : memref<16x384xf32, #tpu.memory_space<vmem>>, vector<16x128xf32>,
    %c0_i32_27 = arith.constant 0 : i32
    %41 = arith.cmpi eq, %arg1, %c0_i32_27 : i32
    %42 = arith.extui %41 : i1 to i32
    %c0_i32_28 = arith.constant 0 : i32
    %43 = arith.cmpi ne, %42, %c0_i32_28 : i32
    scf.if %43 {
      %c0_29 = arith.constant 0 : index
      %c0_30 = arith.constant 0 : index
      %44 = vector.load %arg12[%c0_29, %c0_30] : memref<16x384xf32, #tpu.memory_space<vmem>>, vector<16x384xf32>
      %45 = arith.truncf %44 : vector<16x384xf32> to vector<16x384xbf16>
      %c0_31 = arith.constant 0 : index
      %c0_32 = arith.constant 0 : index
      %46 = vector.load %arg7[%c0_31, %c0_32] : memref<384x256xbf16, #tpu.memory_space<vmem>>, vector<384x256xbf16>
      %cst_33 = arith.constant dense<0.000000e+00> : vector<16x256xf32>
      %47 = tpu.matmul %45, %46, %cst_33 {dimension_numbers = #tpu.dot_dimension_numbers<[1], [0], [0], [1], [0, 0, 1, 1], [], []>} : vector<16x384xbf16>, vector<384x256xbf16>, vector<16x256xf32> -> vector<16x256xf32>
      %c0_34 = arith.constant 0 : index
      %c0_35 = arith.constant 0 : index
      %48 = vector.load %arg8[%c0_34, %c0_35] : memref<1x256xf32, #tpu.memory_space<vmem>>, vector<1x256xf32>
      %49 = vector.broadcast %48 : vector<1x256xf32> to vector<16x256xf32>
      %50 = arith.addf %47, %49 : vector<16x256xf32>
      %cst_36 = arith.constant 0.000000e+00 : f32
      %51 = vector.broadcast %cst_36 : f32 to vector<16x256xf32>
      %52 = arith.maximumf %50, %51 : vector<16x256xf32>
      %53 = arith.truncf %52 : vector<16x256xf32> to vector<16x256xbf16>
      %c0_37 = arith.constant 0 : index
      %c0_38 = arith.constant 0 : index
      %54 = vector.load %arg9[%c0_37, %c0_38] : memref<256x128xbf16, #tpu.memory_space<vmem>>, vector<256x128xbf16>
      %cst_39 = arith.constant dense<0.000000e+00> : vector<16x128xf32>
      %55 = tpu.matmul %53, %54, %cst_39 {dimension_numbers = #tpu.dot_dimension_numbers<[1], [0], [0], [1], [0, 0, 1, 1], [], []>} : vector<16x256xbf16>, vector<256x128xbf16>, vector<16x128xf32> -> vector<16x128xf32>
      %c0_40 = arith.constant 0 : index
      %c0_41 = arith.constant 0 : index
      %56 = vector.load %arg10[%c0_40, %c0_41] : memref<1x128xf32, #tpu.memory_space<vmem>>, vector<1x128xf32>
      %57 = vector.broadcast %56 : vector<1x128xf32> to vector<16x128xf32>
      %58 = arith.addf %55, %57 : vector<16x128xf32>
      %c0_42 = arith.constant 0 : index
      %c0_43 = arith.constant 0 : index
      %59 = vector.load %arg11[%c0_42, %c0_43] : memref<16x128xf32, #tpu.memory_space<vmem>>, vector<16x128xf32>
      tpu.vector_store %arg11[%c0_42, %c0_43], %58 {strides = array<i32>} : memref<16x128xf32, #tpu.memory_space<vmem>>, vector<16x128xf32>,
    } else {
    }
    return
  }
  func.func @transform_0(%arg0: i32, %arg1: i32) -> (i32, i32) {
    %c0_i32 = arith.constant 0 : i32
    %c0_i32_0 = arith.constant 0 : i32
    return %arg1, %c0_i32 : i32, i32
  }
  func.func @transform_1(%arg0: i32, %arg1: i32) -> (i32, i32) {
    %c0_i32 = arith.constant 0 : i32
    return %arg0, %arg1 : i32, i32
  }
  func.func @transform_2(%arg0: i32, %arg1: i32) -> (i32, i32) {
    %c0_i32 = arith.constant 0 : i32
    return %arg0, %arg1 : i32, i32
  }
  func.func @transform_3(%arg0: i32, %arg1: i32) -> (i32, i32) {
    %c0_i32 = arith.constant 0 : i32
    return %arg0, %arg1 : i32, i32
  }
  func.func @transform_4(%arg0: i32, %arg1: i32) -> (i32, i32) {
    %c0_i32 = arith.constant 0 : i32
    %c0_i32_0 = arith.constant 0 : i32
    %c0_i32_1 = arith.constant 0 : i32
    return %c0_i32, %c0_i32_0 : i32, i32
  }
  func.func @transform_5(%arg0: i32, %arg1: i32) -> (i32, i32) {
    %c0_i32 = arith.constant 0 : i32
    %c0_i32_0 = arith.constant 0 : i32
    %c0_i32_1 = arith.constant 0 : i32
    return %c0_i32, %c0_i32_0 : i32, i32
  }
  func.func @transform_6(%arg0: i32, %arg1: i32) -> (i32, i32) {
    %c0_i32 = arith.constant 0 : i32
    %c0_i32_0 = arith.constant 0 : i32
    %c0_i32_1 = arith.constant 0 : i32
    return %c0_i32, %c0_i32_0 : i32, i32
  }
  func.func @transform_7(%arg0: i32, %arg1: i32) -> (i32, i32) {
    %c0_i32 = arith.constant 0 : i32
    %c0_i32_0 = arith.constant 0 : i32
    %c0_i32_1 = arith.constant 0 : i32
    return %c0_i32, %c0_i32_0 : i32, i32
  }
  func.func @transform_8(%arg0: i32, %arg1: i32) -> (i32, i32) {
    %c0_i32 = arith.constant 0 : i32
    %c0_i32_0 = arith.constant 0 : i32
    %c0_i32_1 = arith.constant 0 : i32
    return %c0_i32, %c0_i32_0 : i32, i32
  }
  func.func @transform_9(%arg0: i32, %arg1: i32) -> (i32, i32) {
    %c0_i32 = arith.constant 0 : i32
    %c0_i32_0 = arith.constant 0 : i32
    return %arg0, %c0_i32 : i32, i32
  }
}

</mosaic_0001>

<llo_original>
// kernel: tpu_custom_call.1
$region0: #{tpu_custom_call.1}
  #allocation0 [shape = 'u32[]', space=smem, size = 0x4, offset = 0x4, fixed_abs, tag = 'smem constant byte address 0x4 - core index']
  #allocation1 [shape = 'u32[144,128]{1,0:T(1,128)}', space=vmem, size = 0x12000, scoped, tag = 'internal scratch']
  #allocation2 [shape = 'f32[16,384]{1,0:T(8,128)}', space=vmem, size = 0x6000, scoped, tag = 'scratch operand']
  %s0 = inlined_call_operand.hbm [shape: bf16[128,128], index: 0, kind: input, shape index: {}]
  %s1 = inlined_call_operand.hbm [shape: bf16[16,128], index: 1, kind: input, shape index: {}]
  %s2 = inlined_call_operand.hbm [shape: bf16[16,128], index: 2, kind: input, shape index: {}]
  %s3 = inlined_call_operand.vmem [shape: bf16[16,128], index: 3, kind: input, shape index: {}]
  %s4 = inlined_call_operand.hbm [shape: bf16[128,128], index: 4, kind: input, shape index: {}]
  %s5 = inlined_call_operand.hbm [shape: bf16[384,256], index: 5, kind: input, shape index: {}]
  %s6 = inlined_call_operand.vmem [shape: f32[1,256], index: 6, kind: input, shape index: {}]
  %s7 = inlined_call_operand.hbm [shape: bf16[256,128], index: 7, kind: input, shape index: {}]
  %s8 = inlined_call_operand.vmem [shape: f32[1,128], index: 8, kind: input, shape index: {}]
  %s9 = inlined_call_operand.hbm [shape: f32[16,128], index: 9, kind: output, shape index: {}]
  %s10 = sld [smem:[#allocation0]]
  $region78: #{tpu_custom_call.1} parent=0
    _
  %s12 = ssub.s32 1, %s10
  %s13 = scalar_select 0, %s12, %s10
  $region1: #{tpu_custom_call.1} parent=0
    #allocation3 [shape = 'u8[32768]{0}', space=vmem, size = 0x8000, scoped, tag = 'input window, operand 0, single buffered']
    #allocation4 [shape = 's32[1]{0}', space=sflag, size = 0x4, scoped, tag = 'scoped memory for tpu_custom_call.1']
    #allocation5 [shape = 's32[1]{0}', space=sflag, size = 0x4, scoped, tag = 'scoped memory for tpu_custom_call.1']
    #allocation6 [shape = 'u8[4096]{0}', space=vmem, size = 0x1000, scoped, tag = 'input window, operand 1, single buffered']
    #allocation7 [shape = 's32[1]{0}', space=sflag, size = 0x4, scoped, tag = 'scoped memory for tpu_custom_call.1']
    #allocation8 [shape = 'u8[4096]{0}', space=vmem, size = 0x1000, scoped, tag = 'input window, operand 2, single buffered']
    #allocation9 [shape = 'u8[32768]{0}', space=vmem, size = 0x8000, scoped, tag = 'input window, operand 4, single buffered']
    #allocation10 [shape = 's32[1]{0}', space=sflag, size = 0x4, scoped, tag = 'scoped memory for tpu_custom_call.1']
    #allocation11 [shape = 'u8[196608]{0}', space=vmem, size = 0x30000, scoped, tag = 'input window, operand 5, single buffered']
    #allocation12 [shape = 'u8[65536]{0}', space=vmem, size = 0x10000, scoped, tag = 'input window, operand 7, single buffered']
    #allocation13 [shape = 's32[1]{0}', space=sflag, size = 0x4, scoped, tag = 'scoped memory for tpu_custom_call.1']
    #allocation14 [shape = 'u8[8192]{0}', space=vmem, size = 0x2000, scoped, tag = 'output window, operand 0, single buffered']
    %14 = vsyncpa [#allocation4], 0
    %15 = vsyncpa [#allocation7], 0
    %16 = vsyncpa [#allocation10], 0
    %17 = vsyncpa [#allocation13], 0
    %18 = vsyncpa [#allocation5], 0
    // Predicated region
    $region2: #{tpu_custom_call.1} parent=1 // pred_check
      _
    $region3: #{tpu_custom_call.1} parent=1 // pred_check_branch
      %20 = sbr.rel (0) target = $region5
    $region4: #{tpu_custom_call.1} parent=1 // pred_region
      %s22 = ssub.s32 1024, 1024
      %23 = vsyncadd [#allocation4], %s22
      %s24 = sshll.u32 [#allocation3], 4
      %s25 = int_to_ptr.vmem [resolvable:$true] %s24
      %30 = dma.hbm_to_vmem [thread:$0]  %s0, 1024, %s25, [#allocation4], 64, 64, 4
    $region5: #{tpu_custom_call.1} parent=1 // pred_fallthru
      _
    // Predicated region
    $region6: #{tpu_custom_call.1} parent=1 // pred_check
      _
    $region7: #{tpu_custom_call.1} parent=1 // pred_check_branch
      %32 = sbr.rel (0) target = $region9
    $region8: #{tpu_custom_call.1} parent=1 // pred_region
      %s34 = ssub.s32 128, 128
      %35 = vsyncadd [#allocation7], %s34
      %s36 = sshll.u32 [#allocation6], 4
      %s37 = int_to_ptr.vmem [resolvable:$true] %s36
      %42 = dma.hbm_to_vmem [thread:$0]  %s1, 128, %s37, [#allocation7], 64, 64, 4
    $region9: #{tpu_custom_call.1} parent=1 // pred_fallthru
      _
    // Predicated region
    $region10: #{tpu_custom_call.1} parent=1 // pred_check
      _
    $region11: #{tpu_custom_call.1} parent=1 // pred_check_branch
      %44 = sbr.rel (0) target = $region13
    $region12: #{tpu_custom_call.1} parent=1 // pred_region
      %s46 = ssub.s32 128, 128
      %47 = vsyncadd [#allocation7], %s46
      %s48 = sshll.u32 [#allocation8], 4
      %s49 = int_to_ptr.vmem [resolvable:$true] %s48
      %54 = dma.hbm_to_vmem [thread:$0]  %s2, 128, %s49, [#allocation7], 64, 64, 4
    $region13: #{tpu_custom_call.1} parent=1 // pred_fallthru
      _
    // Predicated region
    $region14: #{tpu_custom_call.1} parent=1 // pred_check
      _
    $region15: #{tpu_custom_call.1} parent=1 // pred_check_branch
      %56 = sbr.rel (0) target = $region17
    $region16: #{tpu_custom_call.1} parent=1 // pred_region
      _
    $region17: #{tpu_custom_call.1} parent=1 // pred_fallthru
      _
    // Predicated region
    $region18: #{tpu_custom_call.1} parent=1 // pred_check
      _
    $region19: #{tpu_custom_call.1} parent=1 // pred_check_branch
      %58 = sbr.rel (0) target = $region21
    $region20: #{tpu_custom_call.1} parent=1 // pred_region
      %s60 = ssub.s32 1024, 1024
      %61 = vsyncadd [#allocation10], %s60
      %s62 = sshll.u32 [#allocation9], 4
      %s63 = int_to_ptr.vmem [resolvable:$true] %s62
      %68 = dma.hbm_to_vmem [thread:$0]  %s4, 1024, %s63, [#allocation10], 64, 64, 4
    $region21: #{tpu_custom_call.1} parent=1 // pred_fallthru
      _
    // Predicated region
    $region22: #{tpu_custom_call.1} parent=1 // pred_check
      _
    $region23: #{tpu_custom_call.1} parent=1 // pred_check_branch
      %70 = sbr.rel (0) target = $region25
    $region24: #{tpu_custom_call.1} parent=1 // pred_region
      %s72 = ssub.s32 6144, 6144
      %73 = vsyncadd [#allocation10], %s72
      %s74 = sshll.u32 [#allocation11], 4
      %s75 = int_to_ptr.vmem [resolvable:$true] %s74
      %80 = dma.hbm_to_vmem [thread:$0]  %s5, 6144, %s75, [#allocation10], 128, 128, 8
    $region25: #{tpu_custom_call.1} parent=1 // pred_fallthru
      _
    // Predicated region
    $region26: #{tpu_custom_call.1} parent=1 // pred_check
      _
    $region27: #{tpu_custom_call.1} parent=1 // pred_check_branch
      %82 = sbr.rel (0) target = $region29
    $region28: #{tpu_custom_call.1} parent=1 // pred_region
      _
    $region29: #{tpu_custom_call.1} parent=1 // pred_fallthru
      _
    // Predicated region
    $region30: #{tpu_custom_call.1} parent=1 // pred_check
      _
    $region31: #{tpu_custom_call.1} parent=1 // pred_check_branch
      %84 = sbr.rel (0) target = $region33
    $region32: #{tpu_custom_call.1} parent=1 // pred_region
      %s86 = ssub.s32 2048, 2048
      %87 = vsyncadd [#allocation13], %s86
      %s88 = sshll.u32 [#allocation12], 4
      %s89 = int_to_ptr.vmem [resolvable:$true] %s88
      %94 = dma.hbm_to_vmem [thread:$0]  %s7, 2048, %s89, [#allocation13], 64, 64, 4
    $region33: #{tpu_custom_call.1} parent=1 // pred_fallthru
      _
    // Predicated region
    $region34: #{tpu_custom_call.1} parent=1 // pred_check
      _
    $region35: #{tpu_custom_call.1} parent=1 // pred_check_branch
      %96 = sbr.rel (0) target = $region37
    $region36: #{tpu_custom_call.1} parent=1 // pred_region
      _
    $region37: #{tpu_custom_call.1} parent=1 // pred_fallthru
      _
    // Predicated region
    $region38: #{tpu_custom_call.1} parent=1 // pred_check
      _
    $region39: #{tpu_custom_call.1} parent=1 // pred_check_branch
      %98 = sbr.rel (0) target = $region41
    $region40: #{tpu_custom_call.1} parent=1 // pred_region
      %99 = dma.done [#allocation4], 1024
    $region41: #{tpu_custom_call.1} parent=1 // pred_fallthru
      _
    // Predicated region
    $region42: #{tpu_custom_call.1} parent=1 // pred_check
      _
    $region43: #{tpu_custom_call.1} parent=1 // pred_check_branch
      %101 = sbr.rel (0) target = $region45
    $region44: #{tpu_custom_call.1} parent=1 // pred_region
      %102 = dma.done [#allocation7], 128
    $region45: #{tpu_custom_call.1} parent=1 // pred_fallthru
      _
    // Predicated region
    $region46: #{tpu_custom_call.1} parent=1 // pred_check
      _
    $region47: #{tpu_custom_call.1} parent=1 // pred_check_branch
      %104 = sbr.rel (0) target = $region49
    $region48: #{tpu_custom_call.1} parent=1 // pred_region
      %105 = dma.done [#allocation7], 128
    $region49: #{tpu_custom_call.1} parent=1 // pred_fallthru
      _
    // Predicated region
    $region50: #{tpu_custom_call.1} parent=1 // pred_check
      _
    $region51: #{tpu_custom_call.1} parent=1 // pred_check_branch
      %107 = sbr.rel (0) target = $region53
    $region52: #{tpu_custom_call.1} parent=1 // pred_region
      %108 = dma.done [#allocation10], 1024
    $region53: #{tpu_custom_call.1} parent=1 // pred_fallthru
      _
    // Predicated region
    $region54: #{tpu_custom_call.1} parent=1 // pred_check
      _
    $region55: #{tpu_custom_call.1} parent=1 // pred_check_branch
      %110 = sbr.rel (0) target = $region57
    $region56: #{tpu_custom_call.1} parent=1 // pred_region
      %111 = dma.done [#allocation10], 6144
    $region57: #{tpu_custom_call.1} parent=1 // pred_fallthru
      _
    // Predicated region
    $region58: #{tpu_custom_call.1} parent=1 // pred_check
      _
    $region59: #{tpu_custom_call.1} parent=1 // pred_check_branch
      %113 = sbr.rel (0) target = $region61
    $region60: #{tpu_custom_call.1} parent=1 // pred_region
      %114 = dma.done [#allocation13], 2048
    $region61: #{tpu_custom_call.1} parent=1 // pred_fallthru
      _
    %p116 = scmp.eq.s32.totalorder 0, 0
    // Predicated region
    $region62: #{tpu_custom_call.1} parent=1 // pred_check
      %p117 = pneg %p116
    $region63: #{tpu_custom_call.1} parent=1 // pred_check_branch
      %119 = sbr.rel (%p117) target = $region65
    $region64: #{tpu_custom_call.1} parent=1 // pred_region
      %120 = vst [vmem:[#allocation2] sm:$0xff] 0.0
      %121 = vst [vmem:[#allocation2 + $0x8] sm:$0xff] 0.0
      %122 = vst [vmem:[#allocation2 + $0x10] sm:$0xff] 0.0
      %123 = vst [vmem:[#allocation2 + $0x18] sm:$0xff] 0.0
      %124 = vst [vmem:[#allocation2 + $0x20] sm:$0xff] 0.0
      %125 = vst [vmem:[#allocation2 + $0x28] sm:$0xff] 0.0
    $region65: #{tpu_custom_call.1} parent=1 // pred_fallthru
      _
    %v126 = vld [vmem:[#allocation3] sm:$0xf]
    %v127 = vld [vmem:[#allocation3 + $0x4] sm:$0xf]
    %v128 = vld [vmem:[#allocation3 + $0x8] sm:$0xf]
    %v129 = vld [vmem:[#allocation3 + $0xc] sm:$0xf]
    %v130 = vld [vmem:[#allocation3 + $0x10] sm:$0xf]
    %v131 = vld [vmem:[#allocation3 + $0x14] sm:$0xf]
    %v132 = vld [vmem:[#allocation3 + $0x18] sm:$0xf]
    %v133 = vld [vmem:[#allocation3 + $0x1c] sm:$0xf]
    %v134 = vld [vmem:[#allocation3 + $0x20] sm:$0xf]
    %v135 = vld [vmem:[#allocation3 + $0x24] sm:$0xf]
    %v136 = vld [vmem:[#allocation3 + $0x28] sm:$0xf]
    %v137 = vld [vmem:[#allocation3 + $0x2c] sm:$0xf]
    %v138 = vld [vmem:[#allocation3 + $0x30] sm:$0xf]
    %v139 = vld [vmem:[#allocation3 + $0x34] sm:$0xf]
    %v140 = vld [vmem:[#allocation3 + $0x38] sm:$0xf]
    %v141 = vld [vmem:[#allocation3 + $0x3c] sm:$0xf]
    %v142 = vunpack.c.l.bf16 %v126
    %v143 = vunpack.c.l.bf16 %v127
    %v144 = vunpack.c.l.bf16 %v128
    %v145 = vunpack.c.l.bf16 %v129
    %v146 = vunpack.c.l.bf16 %v130
    %v147 = vunpack.c.l.bf16 %v131
    %v148 = vunpack.c.l.bf16 %v132
    %v149 = vunpack.c.l.bf16 %v133
    %v150 = vunpack.c.l.bf16 %v134
    %v151 = vunpack.c.l.bf16 %v135
    %v152 = vunpack.c.l.bf16 %v136
    %v153 = vunpack.c.l.bf16 %v137
    %v154 = vunpack.c.l.bf16 %v138
    %v155 = vunpack.c.l.bf16 %v139
    %v156 = vunpack.c.l.bf16 %v140
    %v157 = vunpack.c.l.bf16 %v141
    %v158 = vmul.f32 %v142, %v142
    %v159 = vmul.f32 %v143, %v143
    %v160 = vmul.f32 %v144, %v144
    %v161 = vmul.f32 %v145, %v145
    %v162 = vmul.f32 %v146, %v146
    %v163 = vmul.f32 %v147, %v147
    %v164 = vmul.f32 %v148, %v148
    %v165 = vmul.f32 %v149, %v149
    %v166 = vmul.f32 %v150, %v150
    %v167 = vmul.f32 %v151, %v151
    %v168 = vmul.f32 %v152, %v152
    %v169 = vmul.f32 %v153, %v153
    %v170 = vmul.f32 %v154, %v154
    %v171 = vmul.f32 %v155, %v155
    %v172 = vmul.f32 %v156, %v156
    %v173 = vmul.f32 %v157, %v157
    %174 = vadd.xlane.f32.xlu0 %v158
    %v175 = vpop.xlane.xlu0 %174
    %176 = vadd.xlane.f32.xlu0 %v159
    %v177 = vpop.xlane.xlu0 %176
    %178 = vadd.xlane.f32.xlu0 %v160
    %v179 = vpop.xlane.xlu0 %178
    %180 = vadd.xlane.f32.xlu0 %v161
    %v181 = vpop.xlane.xlu0 %180
    %182 = vadd.xlane.f32.xlu0 %v162
    %v183 = vpop.xlane.xlu0 %182
    %184 = vadd.xlane.f32.xlu0 %v163
    %v185 = vpop.xlane.xlu0 %184
    %186 = vadd.xlane.f32.xlu0 %v164
    %v187 = vpop.xlane.xlu0 %186
    %188 = vadd.xlane.f32.xlu0 %v165
    %v189 = vpop.xlane.xlu0 %188
    %190 = vadd.xlane.f32.xlu0 %v166
    %v191 = vpop.xlane.xlu0 %190
    %192 = vadd.xlane.f32.xlu0 %v167
    %v193 = vpop.xlane.xlu0 %192
    %194 = vadd.xlane.f32.xlu0 %v168
    %v195 = vpop.xlane.xlu0 %194
    %196 = vadd.xlane.f32.xlu0 %v169
    %v197 = vpop.xlane.xlu0 %196
    %198 = vadd.xlane.f32.xlu0 %v170
    %v199 = vpop.xlane.xlu0 %198
    %200 = vadd.xlane.f32.xlu0 %v171
    %v201 = vpop.xlane.xlu0 %200
    %202 = vadd.xlane.f32.xlu0 %v172
    %v203 = vpop.xlane.xlu0 %202
    %204 = vadd.xlane.f32.xlu0 %v173
    %v205 = vpop.xlane.xlu0 %204
    %v206 = vmax.f32 %v175, 1e-24
    %v207 = vmax.f32 %v177, 1e-24
    %v208 = vmax.f32 %v179, 1e-24
    %v209 = vmax.f32 %v181, 1e-24
    %v210 = vmax.f32 %v183, 1e-24
    %v211 = vmax.f32 %v185, 1e-24
    %v212 = vmax.f32 %v187, 1e-24
    %v213 = vmax.f32 %v189, 1e-24
    %v214 = vmax.f32 %v191, 1e-24
    %v215 = vmax.f32 %v193, 1e-24
    %v216 = vmax.f32 %v195, 1e-24
    %v217 = vmax.f32 %v197, 1e-24
    %v218 = vmax.f32 %v199, 1e-24
    %v219 = vmax.f32 %v201, 1e-24
    %v220 = vmax.f32 %v203, 1e-24
    %v221 = vmax.f32 %v205, 1e-24
    %v222 = vrsqrt.pop %v206
    %v223 = vrsqrt.pop %v207
    %v224 = vrsqrt.pop %v208
    %v225 = vrsqrt.pop %v209
    %v226 = vrsqrt.pop %v210
    %v227 = vrsqrt.pop %v211
    %v228 = vrsqrt.pop %v212
    %v229 = vrsqrt.pop %v213
    %v230 = vrsqrt.pop %v214
    %v231 = vrsqrt.pop %v215
    %v232 = vrsqrt.pop %v216
    %v233 = vrsqrt.pop %v217
    %v234 = vrsqrt.pop %v218
    %v235 = vrsqrt.pop %v219
    %v236 = vrsqrt.pop %v220
    %v237 = vrsqrt.pop %v221
    %v238 = vmul.f32 %v142, %v222
    %v239 = vmul.f32 %v143, %v223
    %v240 = vmul.f32 %v144, %v224
    %v241 = vmul.f32 %v145, %v225
    %v242 = vmul.f32 %v146, %v226
    %v243 = vmul.f32 %v147, %v227
    %v244 = vmul.f32 %v148, %v228
    %v245 = vmul.f32 %v149, %v229
    %v246 = vmul.f32 %v150, %v230
    %v247 = vmul.f32 %v151, %v231
    %v248 = vmul.f32 %v152, %v232
    %v249 = vmul.f32 %v153, %v233
    %v250 = vmul.f32 %v154, %v234
    %v251 = vmul.f32 %v155, %v235
    %v252 = vmul.f32 %v156, %v236
    %v253 = vmul.f32 %v157, %v237
    %v254 = vpack.c.bf16 %v239, %v238
    %v255 = vpack.c.bf16 %v241, %v240
    %v256 = vpack.c.bf16 %v243, %v242
    %v257 = vpack.c.bf16 %v245, %v244
    %v258 = vpack.c.bf16 %v247, %v246
    %v259 = vpack.c.bf16 %v249, %v248
    %v260 = vpack.c.bf16 %v251, %v250
    %v261 = vpack.c.bf16 %v253, %v252
    %v262 = vld [vmem:[#allocation9] sm:$0xf]
    %v263 = vld [vmem:[#allocation9 + $0x4] sm:$0xf]
    %v264 = vld [vmem:[#allocation9 + $0x8] sm:$0xf]
    %v265 = vld [vmem:[#allocation9 + $0xc] sm:$0xf]
    %v266 = vld [vmem:[#allocation9 + $0x10] sm:$0xf]
    %v267 = vld [vmem:[#allocation9 + $0x14] sm:$0xf]
    %v268 = vld [vmem:[#allocation9 + $0x18] sm:$0xf]
    %v269 = vld [vmem:[#allocation9 + $0x1c] sm:$0xf]
    %v270 = vld [vmem:[#allocation9 + $0x20] sm:$0xf]
    %v271 = vld [vmem:[#allocation9 + $0x24] sm:$0xf]
    %v272 = vld [vmem:[#allocation9 + $0x28] sm:$0xf]
    %v273 = vld [vmem:[#allocation9 + $0x2c] sm:$0xf]
    %v274 = vld [vmem:[#allocation9 + $0x30] sm:$0xf]
    %v275 = vld [vmem:[#allocation9 + $0x34] sm:$0xf]
    %v276 = vld [vmem:[#allocation9 + $0x38] sm:$0xf]
    %v277 = vld [vmem:[#allocation9 + $0x3c] sm:$0xf]
    %v294 = vunpack.c.l.b16 %v262
    %v295 = vunpack.c.l.b16 %v263
    %v296 = vunpack.c.l.b16 %v264
    %v297 = vunpack.c.l.b16 %v265
    %v298 = vunpack.c.l.b16 %v266
    %v299 = vunpack.c.l.b16 %v267
    %v300 = vunpack.c.l.b16 %v268
    %v301 = vunpack.c.l.b16 %v269
    %v302 = vunpack.c.l.b16 %v270
    %v303 = vunpack.c.l.b16 %v271
    %v304 = vunpack.c.l.b16 %v272
    %v305 = vunpack.c.l.b16 %v273
    %v306 = vunpack.c.l.b16 %v274
    %v307 = vunpack.c.l.b16 %v275
    %v308 = vunpack.c.l.b16 %v276
    %v309 = vunpack.c.l.b16 %v277
    %v310 = vpack.c.b16 %v295, %v294
    %v311 = vpack.c.b16 %v297, %v296
    %v312 = vpack.c.b16 %v299, %v298
    %v313 = vpack.c.b16 %v301, %v300
    %v314 = vpack.c.b16 %v303, %v302
    %v315 = vpack.c.b16 %v305, %v304
    %v316 = vpack.c.b16 %v307, %v306
    %v317 = vpack.c.b16 %v309, %v308
    %326 = vmatprep.subr.bf16.mxu0 0
    %327 = vmatpush1.bf16.msra.mxu0 %v310
    %328 = vmatprep.subr.bf16.mxu0 0
    %329 = vmatpush1.bf16.msra.mxu0 %v311
    %330 = vmatprep.subr.bf16.mxu0 0
    %331 = vmatpush1.bf16.msra.mxu0 %v312
    %332 = vmatprep.subr.bf16.mxu0 0
    %333 = vmatpush1.bf16.msra.mxu0 %v313
    %334 = vmatprep.subr.bf16.mxu0 0
    %335 = vmatpush1.bf16.msra.mxu0 %v314
    %336 = vmatprep.subr.bf16.mxu0 0
    %337 = vmatpush1.bf16.msra.mxu0 %v315
    %338 = vmatprep.subr.bf16.mxu0 0
    %339 = vmatpush1.bf16.msra.mxu0 %v316
    %340 = vmatprep.subr.bf16.mxu0 0
    %341 = vmatpush1.bf16.msra.mxu0 %v317
    %342 = vmatprep.subr.bf16.mxu0 0
    %343 = vmatpush1.bf16.msra.mxu0 0
    %344 = vmatprep.subr.bf16.mxu0 0
    %345 = vmatpush1.bf16.msra.mxu0 0
    %346 = vmatprep.subr.bf16.mxu0 0
    %347 = vmatpush1.bf16.msra.mxu0 0
    %348 = vmatprep.subr.bf16.mxu0 0
    %349 = vmatpush1.bf16.msra.mxu0 0
    %350 = vmatprep.subr.bf16.mxu0 0
    %351 = vmatpush1.bf16.msra.mxu0 0
    %352 = vmatprep.subr.bf16.mxu0 0
    %353 = vmatpush1.bf16.msra.mxu0 0
    %354 = vmatprep.subr.bf16.mxu0 0
    %355 = vmatpush1.bf16.msra.mxu0 0
    %356 = vmatprep.subr.bf16.mxu0 0
    %357 = vmatpush1.bf16.msra.mxu0 0
    %358 = vmatprep.mubr.bf16.mxu0 0
    %359 = vmatmul.mubr.bf16.gmra.mrb[0].mxu0 %v254
    %v360 = vpop.f32.mrb[0].mxu0
    %v361 = vadd.f32 0.0, %v360
    %v362 = vpop.f32.mrb[0].mxu0
    %v363 = vpop.f32.mrb[0].mxu0
    %v364 = vadd.f32 0.0, %v363
    %v365 = vpop.f32.mrb[0].mxu0
    %366 = vmatprep.mubr.bf16.mxu0 0
    %367 = vmatmul.mubr.bf16.gmra.mrb[0].mxu0 %v255
    %v368 = vpop.f32.mrb[0].mxu0
    %v369 = vadd.f32 0.0, %v368
    %v370 = vpop.f32.mrb[0].mxu0
    %v371 = vpop.f32.mrb[0].mxu0
    %v372 = vadd.f32 0.0, %v371
    %v373 = vpop.f32.mrb[0].mxu0
    %374 = vmatprep.mubr.bf16.mxu0 0
    %375 = vmatmul.mubr.bf16.gmra.mrb[0].mxu0 %v256
    %v376 = vpop.f32.mrb[0].mxu0
    %v377 = vadd.f32 0.0, %v376
    %v378 = vpop.f32.mrb[0].mxu0
    %v379 = vpop.f32.mrb[0].mxu0
    %v380 = vadd.f32 0.0, %v379
    %v381 = vpop.f32.mrb[0].mxu0
    %382 = vmatprep.mubr.bf16.mxu0 0
    %383 = vmatmul.mubr.bf16.gmra.mrb[0].mxu0 %v257
    %v384 = vpop.f32.mrb[0].mxu0
    %v385 = vadd.f32 0.0, %v384
    %v386 = vpop.f32.mrb[0].mxu0
    %v387 = vpop.f32.mrb[0].mxu0
    %v388 = vadd.f32 0.0, %v387
    %v389 = vpop.f32.mrb[0].mxu0
    %390 = vmatprep.mubr.bf16.mxu0 0
    %391 = vmatmul.mubr.bf16.gmra.mrb[0].mxu0 %v258
    %v392 = vpop.f32.mrb[0].mxu0
    %v393 = vadd.f32 0.0, %v392
    %v394 = vpop.f32.mrb[0].mxu0
    %v395 = vpop.f32.mrb[0].mxu0
    %v396 = vadd.f32 0.0, %v395
    %v397 = vpop.f32.mrb[0].mxu0
    %398 = vmatprep.mubr.bf16.mxu0 0
    %399 = vmatmul.mubr.bf16.gmra.mrb[0].mxu0 %v259
    %v400 = vpop.f32.mrb[0].mxu0
    %v401 = vadd.f32 0.0, %v400
    %v402 = vpop.f32.mrb[0].mxu0
    %v403 = vpop.f32.mrb[0].mxu0
    %v404 = vadd.f32 0.0, %v403
    %v405 = vpop.f32.mrb[0].mxu0
    %406 = vmatprep.mubr.bf16.mxu0 0
    %407 = vmatmul.mubr.bf16.gmra.mrb[0].mxu0 %v260
    %v408 = vpop.f32.mrb[0].mxu0
    %v409 = vadd.f32 0.0, %v408
    %v410 = vpop.f32.mrb[0].mxu0
    %v411 = vpop.f32.mrb[0].mxu0
    %v412 = vadd.f32 0.0, %v411
    %v413 = vpop.f32.mrb[0].mxu0
    %414 = vmatprep.mubr.bf16.mxu0 0
    %415 = vmatmul.mubr.bf16.gmra.mrb[0].mxu0 %v261
    %v416 = vpop.f32.mrb[0].mxu0
    %v417 = vadd.f32 0.0, %v416
    %v418 = vpop.f32.mrb[0].mxu0
    %v419 = vpop.f32.mrb[0].mxu0
    %v420 = vadd.f32 0.0, %v419
    %v421 = vpop.f32.mrb[0].mxu0
    %422 = vdwg.mxu0
    %v423 = vtanh.pop %v361
    %v424 = vtanh.pop %v364
    %v425 = vtanh.pop %v369
    %v426 = vtanh.pop %v372
    %v427 = vtanh.pop %v377
    %v428 = vtanh.pop %v380
    %v429 = vtanh.pop %v385
    %v430 = vtanh.pop %v388
    %v431 = vtanh.pop %v393
    %v432 = vtanh.pop %v396
    %v433 = vtanh.pop %v401
    %v434 = vtanh.pop %v404
    %v435 = vtanh.pop %v409
    %v436 = vtanh.pop %v412
    %v437 = vtanh.pop %v417
    %v438 = vtanh.pop %v420
    %v439 = vmul.f32 %v423, %v423
    %v440 = vmul.f32 %v424, %v424
    %v441 = vmul.f32 %v425, %v425
    %v442 = vmul.f32 %v426, %v426
    %v443 = vmul.f32 %v427, %v427
    %v444 = vmul.f32 %v428, %v428
    %v445 = vmul.f32 %v429, %v429
    %v446 = vmul.f32 %v430, %v430
    %v447 = vmul.f32 %v431, %v431
    %v448 = vmul.f32 %v432, %v432
    %v449 = vmul.f32 %v433, %v433
    %v450 = vmul.f32 %v434, %v434
    %v451 = vmul.f32 %v435, %v435
    %v452 = vmul.f32 %v436, %v436
    %v453 = vmul.f32 %v437, %v437
    %v454 = vmul.f32 %v438, %v438
    %455 = vadd.xlane.f32.xlu0 %v439
    %v456 = vpop.xlane.xlu0 %455
    %457 = vadd.xlane.f32.xlu0 %v440
    %v458 = vpop.xlane.xlu0 %457
    %459 = vadd.xlane.f32.xlu0 %v441
    %v460 = vpop.xlane.xlu0 %459
    %461 = vadd.xlane.f32.xlu0 %v442
    %v462 = vpop.xlane.xlu0 %461
    %463 = vadd.xlane.f32.xlu0 %v443
    %v464 = vpop.xlane.xlu0 %463
    %465 = vadd.xlane.f32.xlu0 %v444
    %v466 = vpop.xlane.xlu0 %465
    %467 = vadd.xlane.f32.xlu0 %v445
    %v468 = vpop.xlane.xlu0 %467
    %469 = vadd.xlane.f32.xlu0 %v446
    %v470 = vpop.xlane.xlu0 %469
    %471 = vadd.xlane.f32.xlu0 %v447
    %v472 = vpop.xlane.xlu0 %471
    %473 = vadd.xlane.f32.xlu0 %v448
    %v474 = vpop.xlane.xlu0 %473
    %475 = vadd.xlane.f32.xlu0 %v449
    %v476 = vpop.xlane.xlu0 %475
    %477 = vadd.xlane.f32.xlu0 %v450
    %v478 = vpop.xlane.xlu0 %477
    %479 = vadd.xlane.f32.xlu0 %v451
    %v480 = vpop.xlane.xlu0 %479
    %481 = vadd.xlane.f32.xlu0 %v452
    %v482 = vpop.xlane.xlu0 %481
    %483 = vadd.xlane.f32.xlu0 %v453
    %v484 = vpop.xlane.xlu0 %483
    %485 = vadd.xlane.f32.xlu0 %v454
    %v486 = vpop.xlane.xlu0 %485
    %v487 = vmax.f32 %v456, 1e-24
    %v488 = vmax.f32 %v458, 1e-24
    %v489 = vmax.f32 %v460, 1e-24
    %v490 = vmax.f32 %v462, 1e-24
    %v491 = vmax.f32 %v464, 1e-24
    %v492 = vmax.f32 %v466, 1e-24
    %v493 = vmax.f32 %v468, 1e-24
    %v494 = vmax.f32 %v470, 1e-24
    %v495 = vmax.f32 %v472, 1e-24
    %v496 = vmax.f32 %v474, 1e-24
    %v497 = vmax.f32 %v476, 1e-24
    %v498 = vmax.f32 %v478, 1e-24
    %v499 = vmax.f32 %v480, 1e-24
    %v500 = vmax.f32 %v482, 1e-24
    %v501 = vmax.f32 %v484, 1e-24
    %v502 = vmax.f32 %v486, 1e-24
    %v503 = vrsqrt.pop %v487
    %v504 = vrsqrt.pop %v488
    %v505 = vrsqrt.pop %v489
    %v506 = vrsqrt.pop %v490
    %v507 = vrsqrt.pop %v491
    %v508 = vrsqrt.pop %v492
    %v509 = vrsqrt.pop %v493
    %v510 = vrsqrt.pop %v494
    %v511 = vrsqrt.pop %v495
    %v512 = vrsqrt.pop %v496
    %v513 = vrsqrt.pop %v497
    %v514 = vrsqrt.pop %v498
    %v515 = vrsqrt.pop %v499
    %v516 = vrsqrt.pop %v500
    %v517 = vrsqrt.pop %v501
    %v518 = vrsqrt.pop %v502
    %v519 = vmul.f32 %v423, %v503
    %v520 = vmul.f32 %v424, %v504
    %v521 = vmul.f32 %v425, %v505
    %v522 = vmul.f32 %v426, %v506
    %v523 = vmul.f32 %v427, %v507
    %v524 = vmul.f32 %v428, %v508
    %v525 = vmul.f32 %v429, %v509
    %v526 = vmul.f32 %v430, %v510
    %v527 = vmul.f32 %v431, %v511
    %v528 = vmul.f32 %v432, %v512
    %v529 = vmul.f32 %v433, %v513
    %v530 = vmul.f32 %v434, %v514
    %v531 = vmul.f32 %v435, %v515
    %v532 = vmul.f32 %v436, %v516
    %v533 = vmul.f32 %v437, %v517
    %v534 = vmul.f32 %v438, %v518
    %v535 = vpack.c.bf16 %v520, %v519
    %v536 = vpack.c.bf16 %v522, %v521
    %v537 = vpack.c.bf16 %v524, %v523
    %v538 = vpack.c.bf16 %v526, %v525
    %v539 = vpack.c.bf16 %v528, %v527
    %v540 = vpack.c.bf16 %v530, %v529
    %v541 = vpack.c.bf16 %v532, %v531
    %v542 = vpack.c.bf16 %v534, %v533
    %v543 = vld [vmem:[#allocation2] sm:$0xff]
    %v544 = vld [vmem:[#allocation2 + $0x18] sm:$0xff]
    %v545 = vld [vmem:[#allocation6] sm:$0xf]
    %v546 = vld [vmem:[#allocation6 + $0x4] sm:$0xf]
    %v549 = vunpack.c.l.b16 %v545
    %v550 = vunpack.c.l.b16 %v546
    %v551 = vpack.c.b16 %v550, %v549
    %553 = vmatprep.subr.bf16.mxu0 0
    %554 = vmatpush1.bf16.msra.mxu0 %v535
    %555 = vmatprep.subr.bf16.mxu0 0
    %556 = vmatpush1.bf16.msra.mxu0 %v536
    %557 = vmatprep.subr.bf16.mxu0 0
    %558 = vmatpush1.bf16.msra.mxu0 %v537
    %559 = vmatprep.subr.bf16.mxu0 0
    %560 = vmatpush1.bf16.msra.mxu0 %v538
    %561 = vmatprep.subr.bf16.mxu0 0
    %562 = vmatpush1.bf16.msra.mxu0 %v539
    %563 = vmatprep.subr.bf16.mxu0 0
    %564 = vmatpush1.bf16.msra.mxu0 %v540
    %565 = vmatprep.subr.bf16.mxu0 0
    %566 = vmatpush1.bf16.msra.mxu0 %v541
    %567 = vmatprep.subr.bf16.mxu0 0
    %568 = vmatpush1.bf16.msra.mxu0 %v542
    %569 = vmatprep.subr.bf16.mxu0 0
    %570 = vmatpush1.bf16.msra.mxu0 0
    %571 = vmatprep.subr.bf16.mxu0 0
    %572 = vmatpush1.bf16.msra.mxu0 0
    %573 = vmatprep.subr.bf16.mxu0 0
    %574 = vmatpush1.bf16.msra.mxu0 0
    %575 = vmatprep.subr.bf16.mxu0 0
    %576 = vmatpush1.bf16.msra.mxu0 0
    %577 = vmatprep.subr.bf16.mxu0 0
    %578 = vmatpush1.bf16.msra.mxu0 0
    %579 = vmatprep.subr.bf16.mxu0 0
    %580 = vmatpush1.bf16.msra.mxu0 0
    %581 = vmatprep.subr.bf16.mxu0 0
    %582 = vmatpush1.bf16.msra.mxu0 0
    %583 = vmatprep.subr.bf16.mxu0 0
    %584 = vmatpush1.bf16.msra.mxu0 0
    %585 = vmatprep.mubr.bf16.mxu0 0
    %586 = vmatmul.mubr.bf16.gmra.mrb[0].mxu0 %v551
    %v587 = vpop.f32.mrb[0].mxu0
    %v588 = vadd.f32 0.0, %v587
    %v589 = vpop.f32.mrb[0].mxu0
    %v590 = vpop.f32.mrb[0].mxu0
    %v591 = vadd.f32 0.0, %v590
    %v592 = vpop.f32.mrb[0].mxu0
    %593 = vdwg.mxu0
    %v594 = vadd.f32 %v543, %v588
    %v595 = vadd.f32 %v544, %v591
    %596 = vst [vmem:[#allocation2] sm:$0xff] %v594
    %597 = vst [vmem:[#allocation2 + $0x18] sm:$0xff] %v595
    %v598 = vld [vmem:[#allocation2 + $0x8] sm:$0xff]
    %v599 = vld [vmem:[#allocation2 + $0x20] sm:$0xff]
    %v600 = vld [vmem:[#allocation8] sm:$0xf]
    %v601 = vld [vmem:[#allocation8 + $0x4] sm:$0xf]
    %v604 = vunpack.c.l.b16 %v600
    %v605 = vunpack.c.l.b16 %v601
    %v606 = vpack.c.b16 %v605, %v604
    %608 = vmatprep.subr.bf16.mxu0 0
    %609 = vmatpush1.bf16.msra.mxu0 %v535
    %610 = vmatprep.subr.bf16.mxu0 0
    %611 = vmatpush1.bf16.msra.mxu0 %v536
    %612 = vmatprep.subr.bf16.mxu0 0
    %613 = vmatpush1.bf16.msra.mxu0 %v537
    %614 = vmatprep.subr.bf16.mxu0 0
    %615 = vmatpush1.bf16.msra.mxu0 %v538
    %616 = vmatprep.subr.bf16.mxu0 0
    %617 = vmatpush1.bf16.msra.mxu0 %v539
    %618 = vmatprep.subr.bf16.mxu0 0
    %619 = vmatpush1.bf16.msra.mxu0 %v540
    %620 = vmatprep.subr.bf16.mxu0 0
    %621 = vmatpush1.bf16.msra.mxu0 %v541
    %622 = vmatprep.subr.bf16.mxu0 0
    %623 = vmatpush1.bf16.msra.mxu0 %v542
    %624 = vmatprep.subr.bf16.mxu0 0
    %625 = vmatpush1.bf16.msra.mxu0 0
    %626 = vmatprep.subr.bf16.mxu0 0
    %627 = vmatpush1.bf16.msra.mxu0 0
    %628 = vmatprep.subr.bf16.mxu0 0
    %629 = vmatpush1.bf16.msra.mxu0 0
    %630 = vmatprep.subr.bf16.mxu0 0
    %631 = vmatpush1.bf16.msra.mxu0 0
    %632 = vmatprep.subr.bf16.mxu0 0
    %633 = vmatpush1.bf16.msra.mxu0 0
    %634 = vmatprep.subr.bf16.mxu0 0
    %635 = vmatpush1.bf16.msra.mxu0 0
    %636 = vmatprep.subr.bf16.mxu0 0
    %637 = vmatpush1.bf16.msra.mxu0 0
    %638 = vmatprep.subr.bf16.mxu0 0
    %639 = vmatpush1.bf16.msra.mxu0 0
    %640 = vmatprep.mubr.bf16.mxu0 0
    %641 = vmatmul.mubr.bf16.gmra.mrb[0].mxu0 %v606
    %v642 = vpop.f32.mrb[0].mxu0
    %v643 = vadd.f32 0.0, %v642
    %v644 = vpop.f32.mrb[0].mxu0
    %v645 = vpop.f32.mrb[0].mxu0
    %v646 = vadd.f32 0.0, %v645
    %v647 = vpop.f32.mrb[0].mxu0
    %648 = vdwg.mxu0
    %v649 = vadd.f32 %v598, %v643
    %v650 = vadd.f32 %v599, %v646
    %651 = vst [vmem:[#allocation2 + $0x8] sm:$0xff] %v649
    %652 = vst [vmem:[#allocation2 + $0x20] sm:$0xff] %v650
    %v653 = vld [vmem:[#allocation2 + $0x10] sm:$0xff]
    %v654 = vld [vmem:[#allocation2 + $0x28] sm:$0xff]
    %v655 = vld [vmem:[%s3] sm:$0xf]
    %v656 = vld [vmem:[%s3 + $0x4] sm:$0xf]
    %v659 = vunpack.c.l.b16 %v655
    %v660 = vunpack.c.l.b16 %v656
    %v661 = vpack.c.b16 %v660, %v659
    %663 = vmatprep.subr.bf16.mxu0 0
    %664 = vmatpush1.bf16.msra.mxu0 %v535
    %665 = vmatprep.subr.bf16.mxu0 0
    %666 = vmatpush1.bf16.msra.mxu0 %v536
    %667 = vmatprep.subr.bf16.mxu0 0
    %668 = vmatpush1.bf16.msra.mxu0 %v537
    %669 = vmatprep.subr.bf16.mxu0 0
    %670 = vmatpush1.bf16.msra.mxu0 %v538
    %671 = vmatprep.subr.bf16.mxu0 0
    %672 = vmatpush1.bf16.msra.mxu0 %v539
    %673 = vmatprep.subr.bf16.mxu0 0
    %674 = vmatpush1.bf16.msra.mxu0 %v540
    %675 = vmatprep.subr.bf16.mxu0 0
    %676 = vmatpush1.bf16.msra.mxu0 %v541
    %677 = vmatprep.subr.bf16.mxu0 0
    %678 = vmatpush1.bf16.msra.mxu0 %v542
    %679 = vmatprep.subr.bf16.mxu0 0
    %680 = vmatpush1.bf16.msra.mxu0 0
    %681 = vmatprep.subr.bf16.mxu0 0
    %682 = vmatpush1.bf16.msra.mxu0 0
    %683 = vmatprep.subr.bf16.mxu0 0
    %684 = vmatpush1.bf16.msra.mxu0 0
    %685 = vmatprep.subr.bf16.mxu0 0
    %686 = vmatpush1.bf16.msra.mxu0 0
    %687 = vmatprep.subr.bf16.mxu0 0
    %688 = vmatpush1.bf16.msra.mxu0 0
    %689 = vmatprep.subr.bf16.mxu0 0
    %690 = vmatpush1.bf16.msra.mxu0 0
    %691 = vmatprep.subr.bf16.mxu0 0
    %692 = vmatpush1.bf16.msra.mxu0 0
    %693 = vmatprep.subr.bf16.mxu0 0
    %694 = vmatpush1.bf16.msra.mxu0 0
    %695 = vmatprep.mubr.bf16.mxu0 0
    %696 = vmatmul.mubr.bf16.gmra.mrb[0].mxu0 %v661
    %v697 = vpop.f32.mrb[0].mxu0
    %v698 = vadd.f32 0.0, %v697
    %v699 = vpop.f32.mrb[0].mxu0
    %v700 = vpop.f32.mrb[0].mxu0
    %v701 = vadd.f32 0.0, %v700
    %v702 = vpop.f32.mrb[0].mxu0
    %703 = vdwg.mxu0
    %v704 = vadd.f32 %v653, %v698
    %v705 = vadd.f32 %v654, %v701
    %706 = vst [vmem:[#allocation2 + $0x10] sm:$0xff] %v704
    %707 = vst [vmem:[#allocation2 + $0x28] sm:$0xff] %v705
    // Predicated region
    $region66: #{tpu_custom_call.1} parent=1 // pred_check
      %p708 = pneg %p116
    $region67: #{tpu_custom_call.1} parent=1 // pred_check_branch
      %710 = sbr.rel (%p708) target = $region69
    $region68: #{tpu_custom_call.1} parent=1 // pred_region
      %v711 = vld [vmem:[#allocation2] sm:$0xff]
      %v712 = vld [vmem:[#allocation2 + $0x8] sm:$0xff]
      %v713 = vld [vmem:[#allocation2 + $0x10] sm:$0xff]
      %v714 = vld [vmem:[#allocation2 + $0x18] sm:$0xff]
      %v715 = vld [vmem:[#allocation2 + $0x20] sm:$0xff]
      %v716 = vld [vmem:[#allocation2 + $0x28] sm:$0xff]
      %v717 = vpack.c.bf16 %v714, %v711
      %v718 = vpack.c.bf16 %v715, %v712
      %v719 = vpack.c.bf16 %v716, %v713
      %v720 = vld [vmem:[#allocation11] sm:$0xff]
      %v721 = vld [vmem:[#allocation11 + $0x8] sm:$0xff]
      %v722 = vld [vmem:[#allocation11 + $0x10] sm:$0xff]
      %v723 = vld [vmem:[#allocation11 + $0x18] sm:$0xff]
      %v724 = vld [vmem:[#allocation11 + $0x20] sm:$0xff]
      %v725 = vld [vmem:[#allocation11 + $0x28] sm:$0xff]
      %v726 = vld [vmem:[#allocation11 + $0x30] sm:$0xff]
      %v727 = vld [vmem:[#allocation11 + $0x38] sm:$0xff]
      %v728 = vld [vmem:[#allocation11 + $0x40] sm:$0xff]
      %v729 = vld [vmem:[#allocation11 + $0x48] sm:$0xff]
      %v730 = vld [vmem:[#allocation11 + $0x50] sm:$0xff]
      %v731 = vld [vmem:[#allocation11 + $0x58] sm:$0xff]
      %v732 = vld [vmem:[#allocation11 + $0x60] sm:$0xff]
      %v733 = vld [vmem:[#allocation11 + $0x68] sm:$0xff]
      %v734 = vld [vmem:[#allocation11 + $0x70] sm:$0xff]
      %v735 = vld [vmem:[#allocation11 + $0x78] sm:$0xff]
      %v736 = vld [vmem:[#allocation11 + $0x80] sm:$0xff]
      %v737 = vld [vmem:[#allocation11 + $0x88] sm:$0xff]
      %v738 = vld [vmem:[#allocation11 + $0x90] sm:$0xff]
      %v739 = vld [vmem:[#allocation11 + $0x98] sm:$0xff]
      %v740 = vld [vmem:[#allocation11 + $0xa0] sm:$0xff]
      %v741 = vld [vmem:[#allocation11 + $0xa8] sm:$0xff]
      %v742 = vld [vmem:[#allocation11 + $0xb0] sm:$0xff]
      %v743 = vld [vmem:[#allocation11 + $0xb8] sm:$0xff]
      %v744 = vld [vmem:[#allocation11 + $0xc0] sm:$0xff]
      %v745 = vld [vmem:[#allocation11 + $0xc8] sm:$0xff]
      %v746 = vld [vmem:[#allocation11 + $0xd0] sm:$0xff]
      %v747 = vld [vmem:[#allocation11 + $0xd8] sm:$0xff]
      %v748 = vld [vmem:[#allocation11 + $0xe0] sm:$0xff]
      %v749 = vld [vmem:[#allocation11 + $0xe8] sm:$0xff]
      %v750 = vld [vmem:[#allocation11 + $0xf0] sm:$0xff]
      %v751 = vld [vmem:[#allocation11 + $0xf8] sm:$0xff]
      %v752 = vld [vmem:[#allocation11 + $0x100] sm:$0xff]
      %v753 = vld [vmem:[#allocation11 + $0x108] sm:$0xff]
      %v754 = vld [vmem:[#allocation11 + $0x110] sm:$0xff]
      %v755 = vld [vmem:[#allocation11 + $0x118] sm:$0xff]
      %v756 = vld [vmem:[#allocation11 + $0x120] sm:$0xff]
      %v757 = vld [vmem:[#allocation11 + $0x128] sm:$0xff]
      %v758 = vld [vmem:[#allocation11 + $0x130] sm:$0xff]
      %v759 = vld [vmem:[#allocation11 + $0x138] sm:$0xff]
      %v760 = vld [vmem:[#allocation11 + $0x140] sm:$0xff]
      %v761 = vld [vmem:[#allocation11 + $0x148] sm:$0xff]
      %v762 = vld [vmem:[#allocation11 + $0x150] sm:$0xff]
      %v763 = vld [vmem:[#allocation11 + $0x158] sm:$0xff]
      %v764 = vld [vmem:[#allocation11 + $0x160] sm:$0xff]
      %v765 = vld [vmem:[#allocation11 + $0x168] sm:$0xff]
      %v766 = vld [vmem:[#allocation11 + $0x170] sm:$0xff]
      %v767 = vld [vmem:[#allocation11 + $0x178] sm:$0xff]
      %v768 = vld [vmem:[%s6] sm:$0x3]
      %v770 = vlaneseq
      %v771 = vshrl.u32 %v770, 7
      %v772 = vsub.s32 0, %v771
      %v773 = vrot.slane %v768, %v772
      %v774 = vlaneseq
      %v775 = vshrl.u32 %v774, 7
      %v776 = vsub.s32 1, %v775
      %v777 = vrot.slane %v768, %v776
      %v828 = vunpack.c.l.b16 %v720
      %v829 = vunpack.c.h.b16 %v720
      %v830 = vunpack.c.l.b16 %v721
      %v831 = vunpack.c.h.b16 %v721
      %v832 = vunpack.c.l.b16 %v722
      %v833 = vunpack.c.h.b16 %v722
      %v834 = vunpack.c.l.b16 %v723
      %v835 = vunpack.c.h.b16 %v723
      %v836 = vunpack.c.l.b16 %v724
      %v837 = vunpack.c.h.b16 %v724
      %v838 = vunpack.c.l.b16 %v725
      %v839 = vunpack.c.h.b16 %v725
      %v840 = vunpack.c.l.b16 %v726
      %v841 = vunpack.c.h.b16 %v726
      %v842 = vunpack.c.l.b16 %v727
      %v843 = vunpack.c.h.b16 %v727
      %v844 = vunpack.c.l.b16 %v728
      %v845 = vunpack.c.h.b16 %v728
      %v846 = vunpack.c.l.b16 %v729
      %v847 = vunpack.c.h.b16 %v729
      %v848 = vunpack.c.l.b16 %v730
      %v849 = vunpack.c.h.b16 %v730
      %v850 = vunpack.c.l.b16 %v731
      %v851 = vunpack.c.h.b16 %v731
      %v852 = vunpack.c.l.b16 %v732
      %v853 = vunpack.c.h.b16 %v732
      %v854 = vunpack.c.l.b16 %v733
      %v855 = vunpack.c.h.b16 %v733
      %v856 = vunpack.c.l.b16 %v734
      %v857 = vunpack.c.h.b16 %v734
      %v858 = vunpack.c.l.b16 %v735
      %v859 = vunpack.c.h.b16 %v735
      %v860 = vunpack.c.l.b16 %v736
      %v861 = vunpack.c.h.b16 %v736
      %v862 = vunpack.c.l.b16 %v737
      %v863 = vunpack.c.h.b16 %v737
      %v864 = vunpack.c.l.b16 %v738
      %v865 = vunpack.c.h.b16 %v738
      %v866 = vunpack.c.l.b16 %v739
      %v867 = vunpack.c.h.b16 %v739
      %v868 = vunpack.c.l.b16 %v740
      %v869 = vunpack.c.h.b16 %v740
      %v870 = vunpack.c.l.b16 %v741
      %v871 = vunpack.c.h.b16 %v741
      %v872 = vunpack.c.l.b16 %v742
      %v873 = vunpack.c.h.b16 %v742
      %v874 = vunpack.c.l.b16 %v743
      %v875 = vunpack.c.h.b16 %v743
      %v876 = vunpack.c.l.b16 %v744
      %v877 = vunpack.c.h.b16 %v744
      %v878 = vunpack.c.l.b16 %v745
      %v879 = vunpack.c.h.b16 %v745
      %v880 = vunpack.c.l.b16 %v746
      %v881 = vunpack.c.h.b16 %v746
      %v882 = vunpack.c.l.b16 %v747
      %v883 = vunpack.c.h.b16 %v747
      %v884 = vunpack.c.l.b16 %v748
      %v885 = vunpack.c.h.b16 %v748
      %v886 = vunpack.c.l.b16 %v749
      %v887 = vunpack.c.h.b16 %v749
      %v888 = vunpack.c.l.b16 %v750
      %v889 = vunpack.c.h.b16 %v750
      %v890 = vunpack.c.l.b16 %v751
      %v891 = vunpack.c.h.b16 %v751
      %v892 = vunpack.c.l.b16 %v752
      %v893 = vunpack.c.h.b16 %v752
      %v894 = vunpack.c.l.b16 %v753
      %v895 = vunpack.c.h.b16 %v753
      %v896 = vunpack.c.l.b16 %v754
      %v897 = vunpack.c.h.b16 %v754
      %v898 = vunpack.c.l.b16 %v755
      %v899 = vunpack.c.h.b16 %v755
      %v900 = vunpack.c.l.b16 %v756
      %v901 = vunpack.c.h.b16 %v756
      %v902 = vunpack.c.l.b16 %v757
      %v903 = vunpack.c.h.b16 %v757
      %v904 = vunpack.c.l.b16 %v758
      %v905 = vunpack.c.h.b16 %v758
      %v906 = vunpack.c.l.b16 %v759
      %v907 = vunpack.c.h.b16 %v759
      %v908 = vunpack.c.l.b16 %v760
      %v909 = vunpack.c.h.b16 %v760
      %v910 = vunpack.c.l.b16 %v761
      %v911 = vunpack.c.h.b16 %v761
      %v912 = vunpack.c.l.b16 %v762
      %v913 = vunpack.c.h.b16 %v762
      %v914 = vunpack.c.l.b16 %v763
      %v915 = vunpack.c.h.b16 %v763
      %v916 = vunpack.c.l.b16 %v764
      %v917 = vunpack.c.h.b16 %v764
      %v918 = vunpack.c.l.b16 %v765
      %v919 = vunpack.c.h.b16 %v765
      %v920 = vunpack.c.l.b16 %v766
      %v921 = vunpack.c.h.b16 %v766
      %v922 = vunpack.c.l.b16 %v767
      %v923 = vunpack.c.h.b16 %v767
      %v924 = vpack.c.b16 %v830, %v828
      %v925 = vpack.c.b16 %v831, %v829
      %v926 = vpack.c.b16 %v834, %v832
      %v927 = vpack.c.b16 %v835, %v833
      %v928 = vpack.c.b16 %v838, %v836
      %v929 = vpack.c.b16 %v839, %v837
      %v930 = vpack.c.b16 %v842, %v840
      %v931 = vpack.c.b16 %v843, %v841
      %v932 = vpack.c.b16 %v846, %v844
      %v933 = vpack.c.b16 %v847, %v845
      %v934 = vpack.c.b16 %v850, %v848
      %v935 = vpack.c.b16 %v851, %v849
      %v936 = vpack.c.b16 %v854, %v852
      %v937 = vpack.c.b16 %v855, %v853
      %v938 = vpack.c.b16 %v858, %v856
      %v939 = vpack.c.b16 %v859, %v857
      %v940 = vpack.c.b16 %v862, %v860
      %v941 = vpack.c.b16 %v863, %v861
      %v942 = vpack.c.b16 %v866, %v864
      %v943 = vpack.c.b16 %v867, %v865
      %v944 = vpack.c.b16 %v870, %v868
      %v945 = vpack.c.b16 %v871, %v869
      %v946 = vpack.c.b16 %v874, %v872
      %v947 = vpack.c.b16 %v875, %v873
      %v948 = vpack.c.b16 %v878, %v876
      %v949 = vpack.c.b16 %v879, %v877
      %v950 = vpack.c.b16 %v882, %v880
      %v951 = vpack.c.b16 %v883, %v881
      %v952 = vpack.c.b16 %v886, %v884
      %v953 = vpack.c.b16 %v887, %v885
      %v954 = vpack.c.b16 %v890, %v888
      %v955 = vpack.c.b16 %v891, %v889
      %v956 = vpack.c.b16 %v894, %v892
      %v957 = vpack.c.b16 %v895, %v893
      %v958 = vpack.c.b16 %v898, %v896
      %v959 = vpack.c.b16 %v899, %v897
      %v960 = vpack.c.b16 %v902, %v900
      %v961 = vpack.c.b16 %v903, %v901
      %v962 = vpack.c.b16 %v906, %v904
      %v963 = vpack.c.b16 %v907, %v905
      %v964 = vpack.c.b16 %v910, %v908
      %v965 = vpack.c.b16 %v911, %v909
      %v966 = vpack.c.b16 %v914, %v912
      %v967 = vpack.c.b16 %v915, %v913
      %v968 = vpack.c.b16 %v918, %v916
      %v969 = vpack.c.b16 %v919, %v917
      %v970 = vpack.c.b16 %v922, %v920
      %v971 = vpack.c.b16 %v923, %v921
      %1020 = vmatprep.subr.bf16.mxu0 %v925
      %1021 = vmatpush1.bf16.msra.mxu0 %v924
      %1022 = vmatprep.subr.bf16.mxu0 %v927
      %1023 = vmatpush1.bf16.msra.mxu0 %v926
      %1024 = vmatprep.subr.bf16.mxu0 %v929
      %1025 = vmatpush1.bf16.msra.mxu0 %v928
      %1026 = vmatprep.subr.bf16.mxu0 %v931
      %1027 = vmatpush1.bf16.msra.mxu0 %v930
      %1028 = vmatprep.subr.bf16.mxu0 %v933
      %1029 = vmatpush1.bf16.msra.mxu0 %v932
      %1030 = vmatprep.subr.bf16.mxu0 %v935
      %1031 = vmatpush1.bf16.msra.mxu0 %v934
      %1032 = vmatprep.subr.bf16.mxu0 %v937
      %1033 = vmatpush1.bf16.msra.mxu0 %v936
      %1034 = vmatprep.subr.bf16.mxu0 %v939
      %1035 = vmatpush1.bf16.msra.mxu0 %v938
      %1036 = vmatprep.subr.bf16.mxu0 %v941
      %1037 = vmatpush1.bf16.msra.mxu0 %v940
      %1038 = vmatprep.subr.bf16.mxu0 %v943
      %1039 = vmatpush1.bf16.msra.mxu0 %v942
      %1040 = vmatprep.subr.bf16.mxu0 %v945
      %1041 = vmatpush1.bf16.msra.mxu0 %v944
      %1042 = vmatprep.subr.bf16.mxu0 %v947
      %1043 = vmatpush1.bf16.msra.mxu0 %v946
      %1044 = vmatprep.subr.bf16.mxu0 %v949
      %1045 = vmatpush1.bf16.msra.mxu0 %v948
      %1046 = vmatprep.subr.bf16.mxu0 %v951
      %1047 = vmatpush1.bf16.msra.mxu0 %v950
      %1048 = vmatprep.subr.bf16.mxu0 %v953
      %1049 = vmatpush1.bf16.msra.mxu0 %v952
      %1050 = vmatprep.subr.bf16.mxu0 %v955
      %1051 = vmatpush1.bf16.msra.mxu0 %v954
      %1052 = vmatprep.mubr.bf16.mxu0 %v718
      %1053 = vmatmul.mubr.bf16.gmra.mrb[0].mxu0 %v717
      %v1054 = vpop.f32.mrb[0].mxu0
      %v1055 = vadd.f32 %v773, %v1054
      %v1056 = vpop.f32.mrb[0].mxu0
      %v1057 = vadd.f32 %v777, %v1056
      %v1058 = vpop.f32.mrb[0].mxu0
      %v1059 = vadd.f32 %v773, %v1058
      %v1060 = vpop.f32.mrb[0].mxu0
      %v1061 = vadd.f32 %v777, %v1060
      %1062 = vdwg.mxu0
      %1063 = vmatprep.subr.bf16.mxu0 %v957
      %1064 = vmatpush1.bf16.msra.mxu0 %v956
      %1065 = vmatprep.subr.bf16.mxu0 %v959
      %1066 = vmatpush1.bf16.msra.mxu0 %v958
      %1067 = vmatprep.subr.bf16.mxu0 %v961
      %1068 = vmatpush1.bf16.msra.mxu0 %v960
      %1069 = vmatprep.subr.bf16.mxu0 %v963
      %1070 = vmatpush1.bf16.msra.mxu0 %v962
      %1071 = vmatprep.subr.bf16.mxu0 %v965
      %1072 = vmatpush1.bf16.msra.mxu0 %v964
      %1073 = vmatprep.subr.bf16.mxu0 %v967
      %1074 = vmatpush1.bf16.msra.mxu0 %v966
      %1075 = vmatprep.subr.bf16.mxu0 %v969
      %1076 = vmatpush1.bf16.msra.mxu0 %v968
      %1077 = vmatprep.subr.bf16.mxu0 %v971
      %1078 = vmatpush1.bf16.msra.mxu0 %v970
      %1079 = vmatprep.subr.bf16.mxu0 0
      %1080 = vmatpush1.bf16.msra.mxu0 0
      %1081 = vmatprep.subr.bf16.mxu0 0
      %1082 = vmatpush1.bf16.msra.mxu0 0
      %1083 = vmatprep.subr.bf16.mxu0 0
      %1084 = vmatpush1.bf16.msra.mxu0 0
      %1085 = vmatprep.subr.bf16.mxu0 0
      %1086 = vmatpush1.bf16.msra.mxu0 0
      %1087 = vmatprep.subr.bf16.mxu0 0
      %1088 = vmatpush1.bf16.msra.mxu0 0
      %1089 = vmatprep.subr.bf16.mxu0 0
      %1090 = vmatpush1.bf16.msra.mxu0 0
      %1091 = vmatprep.subr.bf16.mxu0 0
      %1092 = vmatpush1.bf16.msra.mxu0 0
      %1093 = vmatprep.subr.bf16.mxu0 0
      %1094 = vmatpush1.bf16.msra.mxu0 0
      %1095 = vmatprep.mubr.bf16.mxu0 0
      %1096 = vmatmul.mubr.bf16.gmra.mrb[0].mxu0 %v719
      %v1097 = vpop.f32.mrb[0].mxu0
      %v1098 = vadd.f32 %v1055, %v1097
      %v1099 = vpop.f32.mrb[0].mxu0
      %v1100 = vadd.f32 %v1057, %v1099
      %v1101 = vpop.f32.mrb[0].mxu0
      %v1102 = vadd.f32 %v1059, %v1101
      %v1103 = vpop.f32.mrb[0].mxu0
      %v1104 = vadd.f32 %v1061, %v1103
      %1105 = vdwg.mxu0
      %v1106 = vmax.f32 %v1098, 0.0
      %v1107 = vmax.f32 %v1100, 0.0
      %v1108 = vmax.f32 %v1102, 0.0
      %v1109 = vmax.f32 %v1104, 0.0
      %v1110 = vpack.c.bf16 %v1108, %v1106
      %v1111 = vpack.c.bf16 %v1109, %v1107
      %v1112 = vld [vmem:[#allocation12] sm:$0xf]
      %v1113 = vld [vmem:[#allocation12 + $0x4] sm:$0xf]
      %v1114 = vld [vmem:[#allocation12 + $0x8] sm:$0xf]
      %v1115 = vld [vmem:[#allocation12 + $0xc] sm:$0xf]
      %v1116 = vld [vmem:[#allocation12 + $0x10] sm:$0xf]
      %v1117 = vld [vmem:[#allocation12 + $0x14] sm:$0xf]
      %v1118 = vld [vmem:[#allocation12 + $0x18] sm:$0xf]
      %v1119 = vld [vmem:[#allocation12 + $0x1c] sm:$0xf]
      %v1120 = vld [vmem:[#allocation12 + $0x20] sm:$0xf]
      %v1121 = vld [vmem:[#allocation12 + $0x24] sm:$0xf]
      %v1122 = vld [vmem:[#allocation12 + $0x28] sm:$0xf]
      %v1123 = vld [vmem:[#allocation12 + $0x2c] sm:$0xf]
      %v1124 = vld [vmem:[#allocation12 + $0x30] sm:$0xf]
      %v1125 = vld [vmem:[#allocation12 + $0x34] sm:$0xf]
      %v1126 = vld [vmem:[#allocation12 + $0x38] sm:$0xf]
      %v1127 = vld [vmem:[#allocation12 + $0x3c] sm:$0xf]
      %v1128 = vld [vmem:[#allocation12 + $0x40] sm:$0xf]
      %v1129 = vld [vmem:[#allocation12 + $0x44] sm:$0xf]
      %v1130 = vld [vmem:[#allocation12 + $0x48] sm:$0xf]
      %v1131 = vld [vmem:[#allocation12 + $0x4c] sm:$0xf]
      %v1132 = vld [vmem:[#allocation12 + $0x50] sm:$0xf]
      %v1133 = vld [vmem:[#allocation12 + $0x54] sm:$0xf]
      %v1134 = vld [vmem:[#allocation12 + $0x58] sm:$0xf]
      %v1135 = vld [vmem:[#allocation12 + $0x5c] sm:$0xf]
      %v1136 = vld [vmem:[#allocation12 + $0x60] sm:$0xf]
      %v1137 = vld [vmem:[#allocation12 + $0x64] sm:$0xf]
      %v1138 = vld [vmem:[#allocation12 + $0x68] sm:$0xf]
      %v1139 = vld [vmem:[#allocation12 + $0x6c] sm:$0xf]
      %v1140 = vld [vmem:[#allocation12 + $0x70] sm:$0xf]
      %v1141 = vld [vmem:[#allocation12 + $0x74] sm:$0xf]
      %v1142 = vld [vmem:[#allocation12 + $0x78] sm:$0xf]
      %v1143 = vld [vmem:[#allocation12 + $0x7c] sm:$0xf]
      %v1144 = vld [vmem:[%s8] sm:$0x1]
      %v1146 = vlaneseq
      %v1147 = vshrl.u32 %v1146, 7
      %v1148 = vsub.s32 0, %v1147
      %v1149 = vrot.slane %v1144, %v1148
      %v1183 = vunpack.c.l.b16 %v1112
      %v1184 = vunpack.c.l.b16 %v1113
      %v1185 = vunpack.c.l.b16 %v1114
      %v1186 = vunpack.c.l.b16 %v1115
      %v1187 = vunpack.c.l.b16 %v1116
      %v1188 = vunpack.c.l.b16 %v1117
      %v1189 = vunpack.c.l.b16 %v1118
      %v1190 = vunpack.c.l.b16 %v1119
      %v1191 = vunpack.c.l.b16 %v1120
      %v1192 = vunpack.c.l.b16 %v1121
      %v1193 = vunpack.c.l.b16 %v1122
      %v1194 = vunpack.c.l.b16 %v1123
      %v1195 = vunpack.c.l.b16 %v1124
      %v1196 = vunpack.c.l.b16 %v1125
      %v1197 = vunpack.c.l.b16 %v1126
      %v1198 = vunpack.c.l.b16 %v1127
      %v1199 = vunpack.c.l.b16 %v1128
      %v1200 = vunpack.c.l.b16 %v1129
      %v1201 = vunpack.c.l.b16 %v1130
      %v1202 = vunpack.c.l.b16 %v1131
      %v1203 = vunpack.c.l.b16 %v1132
      %v1204 = vunpack.c.l.b16 %v1133
      %v1205 = vunpack.c.l.b16 %v1134
      %v1206 = vunpack.c.l.b16 %v1135
      %v1207 = vunpack.c.l.b16 %v1136
      %v1208 = vunpack.c.l.b16 %v1137
      %v1209 = vunpack.c.l.b16 %v1138
      %v1210 = vunpack.c.l.b16 %v1139
      %v1211 = vunpack.c.l.b16 %v1140
      %v1212 = vunpack.c.l.b16 %v1141
      %v1213 = vunpack.c.l.b16 %v1142
      %v1214 = vunpack.c.l.b16 %v1143
      %v1215 = vpack.c.b16 %v1184, %v1183
      %v1216 = vpack.c.b16 %v1186, %v1185
      %v1217 = vpack.c.b16 %v1188, %v1187
      %v1218 = vpack.c.b16 %v1190, %v1189
      %v1219 = vpack.c.b16 %v1192, %v1191
      %v1220 = vpack.c.b16 %v1194, %v1193
      %v1221 = vpack.c.b16 %v1196, %v1195
      %v1222 = vpack.c.b16 %v1198, %v1197
      %v1223 = vpack.c.b16 %v1200, %v1199
      %v1224 = vpack.c.b16 %v1202, %v1201
      %v1225 = vpack.c.b16 %v1204, %v1203
      %v1226 = vpack.c.b16 %v1206, %v1205
      %v1227 = vpack.c.b16 %v1208, %v1207
      %v1228 = vpack.c.b16 %v1210, %v1209
      %v1229 = vpack.c.b16 %v1212, %v1211
      %v1230 = vpack.c.b16 %v1214, %v1213
      %1247 = vmatprep.subr.bf16.mxu0 0
      %1248 = vmatpush1.bf16.msra.mxu0 %v1215
      %1249 = vmatprep.subr.bf16.mxu0 0
      %1250 = vmatpush1.bf16.msra.mxu0 %v1216
      %1251 = vmatprep.subr.bf16.mxu0 0
      %1252 = vmatpush1.bf16.msra.mxu0 %v1217
      %1253 = vmatprep.subr.bf16.mxu0 0
      %1254 = vmatpush1.bf16.msra.mxu0 %v1218
      %1255 = vmatprep.subr.bf16.mxu0 0
      %1256 = vmatpush1.bf16.msra.mxu0 %v1219
      %1257 = vmatprep.subr.bf16.mxu0 0
      %1258 = vmatpush1.bf16.msra.mxu0 %v1220
      %1259 = vmatprep.subr.bf16.mxu0 0
      %1260 = vmatpush1.bf16.msra.mxu0 %v1221
      %1261 = vmatprep.subr.bf16.mxu0 0
      %1262 = vmatpush1.bf16.msra.mxu0 %v1222
      %1263 = vmatprep.subr.bf16.mxu0 0
      %1264 = vmatpush1.bf16.msra.mxu0 %v1223
      %1265 = vmatprep.subr.bf16.mxu0 0
      %1266 = vmatpush1.bf16.msra.mxu0 %v1224
      %1267 = vmatprep.subr.bf16.mxu0 0
      %1268 = vmatpush1.bf16.msra.mxu0 %v1225
      %1269 = vmatprep.subr.bf16.mxu0 0
      %1270 = vmatpush1.bf16.msra.mxu0 %v1226
      %1271 = vmatprep.subr.bf16.mxu0 0
      %1272 = vmatpush1.bf16.msra.mxu0 %v1227
      %1273 = vmatprep.subr.bf16.mxu0 0
      %1274 = vmatpush1.bf16.msra.mxu0 %v1228
      %1275 = vmatprep.subr.bf16.mxu0 0
      %1276 = vmatpush1.bf16.msra.mxu0 %v1229
      %1277 = vmatprep.subr.bf16.mxu0 0
      %1278 = vmatpush1.bf16.msra.mxu0 %v1230
      %1279 = vmatprep.mubr.bf16.mxu0 %v1111
      %1280 = vmatmul.mubr.bf16.gmra.mrb[0].mxu0 %v1110
      %v1281 = vpop.f32.mrb[0].mxu0
      %v1282 = vadd.f32 %v1149, %v1281
      %v1283 = vpop.f32.mrb[0].mxu0
      %v1284 = vpop.f32.mrb[0].mxu0
      %v1285 = vadd.f32 %v1149, %v1284
      %v1286 = vpop.f32.mrb[0].mxu0
      %1287 = vdwg.mxu0
      %1288 = vst [vmem:[#allocation14] sm:$0xff] %v1282
      %1289 = vst [vmem:[#allocation14 + $0x8] sm:$0xff] %v1285
    $region69: #{tpu_custom_call.1} parent=1 // pred_fallthru
      _
    // Predicated region
    $region70: #{tpu_custom_call.1} parent=1 // pred_check
      _
    $region71: #{tpu_custom_call.1} parent=1 // pred_check_branch
      %1291 = sbr.rel (0) target = $region73
    $region72: #{tpu_custom_call.1} parent=1 // pred_region
      %s1293 = ssub.s32 256, 256
      %1294 = vsyncadd [#allocation5], %s1293
      %s1295 = sshll.u32 [#allocation14], 4
      %s1296 = int_to_ptr.vmem [resolvable:$true] %s1295
      %1301 = dma.vmem_to_hbm [thread:$0]  %s1296, 256, %s9, [#allocation5], 128, 128, 8
    $region73: #{tpu_custom_call.1} parent=1 // pred_fallthru
      _
    // Predicated region
    $region74: #{tpu_custom_call.1} parent=1 // pred_check
      _
    $region75: #{tpu_custom_call.1} parent=1 // pred_check_branch
      %1303 = sbr.rel (0) target = $region77
    $region76: #{tpu_custom_call.1} parent=1 // pred_region
      %1304 = dma.done [#allocation5], 256
    $region77: #{tpu_custom_call.1} parent=1 // pred_fallthru
      _
    %1305 = vsyncpa [#allocation4], 1
    %1306 = vsyncpa [#allocation7], 1
    %1307 = vsyncpa [#allocation10], 1
    %1308 = vsyncpa [#allocation13], 1
    %1309 = vsyncpa [#allocation5], 1

</llo_original>
